<compile_context>
chip_gen: v5e
topology: v5e:2x2
jax: 0.10.0
libtpu: 0.0.40
codegen_flags: <defaults>
</compile_context>

<pallas_src>
import functools

import jax
import jax.numpy as jnp
from jax.experimental import pallas as pl
from jax.experimental.pallas import tpu as pltpu

LEAKY_SLOPE = 0.01     # F.leaky_relu default
MSG_EPS = 1e-7         # GENConv message eps
BN_EPS = 1e-5          # BatchNorm1d eps (training-mode batch stats; module default is .train())
PAIRNORM_EPS = 1e-5    # PairNorm eps

DST_TILE = 512         # destination-node tile (sublane axis); multiple of 8
SRC_TILE = 1024        # source-node tile streamed over the adjacency; multiple of 128


@functools.lru_cache(maxsize=None)
def _vmem_limit_bytes():
    """Generation-aware scoped-VMEM budget.

    ~48 MiB on v7x (64 MiB physical per TensorCore), ~100 MiB on v5e/v6e (128 MiB).
    """
    cap = 64 * 1024 * 1024
    try:
        info = pltpu.get_tpu_info()
        cap = int(getattr(info, "vmem_capacity_bytes", cap))
    except Exception:
        pass
    return max(32 * 1024 * 1024, min(cap - 16 * 1024 * 1024, 100 * 1024 * 1024))


def _tile(n, preferred):
    t = min(preferred, n)
    assert n % t == 0, f"node count {n} must be a multiple of tile size {t}"
    return t


# ----------------------------------------------------------------------------
# Kernel 1: h = leaky_relu(x @ W + b) + PE      (tiled over nodes, "parallel")
# ----------------------------------------------------------------------------
def embed_kernel(x_ref, w_ref, b_ref, pe_ref, o_ref):
    y = jnp.dot(x_ref[...], w_ref[...], preferred_element_type=jnp.float32) + b_ref[...]
    y = jnp.where(y > 0, y, LEAKY_SLOPE * y)
    o_ref[...] = y + pe_ref[...]


def embed(x, w, b, pe):
    n, in_dim = x.shape
    d = w.shape[1]
    tm = _tile(n, DST_TILE)
    return pl.pallas_call(
        embed_kernel,
        out_shape=jax.ShapeDtypeStruct((n, d), jnp.float32),
        grid=(n // tm,),
        in_specs=[
            pl.BlockSpec((tm, in_dim), lambda i: (i, 0)),
            pl.BlockSpec((in_dim, d), lambda i: (0, 0)),
            pl.BlockSpec((1, d), lambda i: (0, 0)),
            pl.BlockSpec((tm, d), lambda i: (i, 0)),
        ],
        out_specs=pl.BlockSpec((tm, d), lambda i: (i, 0)),
        compiler_params=pltpu.CompilerParams(
            dimension_semantics=("parallel",), vmem_limit_bytes=_vmem_limit_bytes()),
    )(x, w, b, pe)


# ----------------------------------------------------------------------------
# Kernel 2: GENConv message -> rhs = [e*m | e]  (tiled over nodes, t in SMEM)
# TODO(synk): fuse this into the epilogue of the producing kernel (embed / mlp pass3)
#             to save one O(N*D) round-trip per layer (minor vs O(N^2) traffic).
# ----------------------------------------------------------------------------
def message_kernel(t_ref, h_ref, rhs_ref):
    t = t_ref[0, 0]                                  # learnable temperature (SMEM scalar)
    d = h_ref.shape[-1]
    m = jnp.maximum(h_ref[...], 0.0) + MSG_EPS       # message_j = relu(x_j) + eps
    e = jnp.exp(t * m)                               # softmax weights (learn_t)
    rhs_ref[:, :d] = (e * m).astype(rhs_ref.dtype)   # numerator half
    rhs_ref[:, d:] = e.astype(rhs_ref.dtype)         # denominator half


def messages(h, t):
    n, d = h.shape
    tm = _tile(n, DST_TILE)
    return pl.pallas_call(
        message_kernel,
        out_shape=jax.ShapeDtypeStruct((n, 2 * d), jnp.bfloat16),
        grid=(n // tm,),
        in_specs=[
            pl.BlockSpec(memory_space=pltpu.MemorySpace.SMEM),   # (1,1) temperature
            pl.BlockSpec((tm, d), lambda i: (i, 0)),
        ],
        out_specs=pl.BlockSpec((tm, 2 * d), lambda i: (i, 0)),
        compiler_params=pltpu.CompilerParams(
            dimension_semantics=("parallel",), vmem_limit_bytes=_vmem_limit_bytes()),
    )(t, h)


# ----------------------------------------------------------------------------
# Kernel 3: softmax aggregation  aggr = (A @ (e*m)) / (A @ e)
#           grid = (dst tiles "parallel", src tiles "arbitrary"), fused num/den,
#           rhs kept fully resident in VMEM when it fits.
# ----------------------------------------------------------------------------
def aggregate_kernel(a_ref, rhs_ref, o_ref, acc_ref, *, tk, rhs_resident):
    k = pl.program_id(1)

    @pl.when(k == 0)
    def _():
        acc_ref[...] = jnp.zeros_like(acc_ref)

    if rhs_resident:
        # rhs is the full (N, 2D) operand living in VMEM for the whole call; take the
        # src slice for this step (aligned dynamic slice on the sublane axis).
        src0 = pl.multiple_of(k * tk, tk)
        rhs_tile = rhs_ref[pl.ds(src0, tk), :]
    else:
        rhs_tile = rhs_ref[...]

    # One wide MXU pass computes both the numerator (A @ (e*m)) and denominator (A @ e).
    acc_ref[...] += jnp.dot(a_ref[...], rhs_tile, preferred_element_type=jnp.float32)

    @pl.when(k == pl.num_programs(1) - 1)
    def _():
        d = o_ref.shape[-1]
        num = acc_ref[:, :d]
        den = acc_ref[:, d:]
        # Divide only after full accumulation over all source tiles; nodes with
        # no in-edges (den == 0) aggregate to 0.  Reciprocal on the EUP is ~free.
        o_ref[...] = jnp.where(den > 0.0,
                               num * pl.reciprocal(den, approx=True),
                               0.0)


def aggregate(adj_bf16, rhs, d):
    n = adj_bf16.shape[0]
    tm = _tile(n, DST_TILE)
    tk = _tile(n, SRC_TILE)
    vmem = _vmem_limit_bytes()

    # Resident-rhs strategy: rhs is only N*2D*2 bytes (bf16); keeping it in VMEM removes
    # the per-dst-tile re-stream (which would otherwise rival the adjacency traffic).
    # Fall back to streaming (tk, 2D) slices if it does not fit the per-generation budget.
    rhs_bytes = n * (2 * d) * 2
    tiles_bytes = (2 * tm * tk * 2          # double-buffered bf16 adjacency tiles
                   + tm * 2 * d * 4         # f32 accumulator scratch
                   + 2 * tm * d * 4)        # double-buffered f32 output tile
    rhs_resident = (2 * rhs_bytes + tiles_bytes) <= int(0.75 * vmem)

    if rhs_resident:
        rhs_spec = pl.BlockSpec((n, 2 * d), lambda i, k: (0, 0))   # fetched once, resident
    else:
        rhs_spec = pl.BlockSpec((tk, 2 * d), lambda i, k: (k, 0))  # streamed per src step

    kernel = functools.partial(aggregate_kernel, tk=tk, rhs_resident=rhs_resident)
    return pl.pallas_call(
        kernel,
        out_shape=jax.ShapeDtypeStruct((n, d), jnp.float32),
        grid=(n // tm, n // tk),
        in_specs=[
            # TODO(synk): sweep pipeline_mode=pl.Buffered(3) on the adjacency stream on
            #             v7x if a profile shows exposed DMA.
            # TODO(synk): int8 adjacency storage (multiplicities <= 127) on v5e/v6e, fp8
            #             on v7x, to halve the dominant HBM stream again.
            pl.BlockSpec((tm, tk), lambda i, k: (i, k)),       # adjacency tile (bf16)
            rhs_spec,                                          # [e*m | e] (bf16)
        ],
        out_specs=pl.BlockSpec((tm, d), lambda i, k: (i, 0)),
        scratch_shapes=[pltpu.VMEM((tm, 2 * d), jnp.float32)],
        compiler_params=pltpu.CompilerParams(
            dimension_semantics=("parallel", "arbitrary"),
            vmem_limit_bytes=vmem),
    )(adj_bf16, rhs)


# ----------------------------------------------------------------------------
# Kernels 4-6: GENConv MLP + BatchNorm(batch stats) + PairNorm + ReLU (+residual),
#              tiled over nodes with cross-tile stat accumulation.
# ----------------------------------------------------------------------------
def mlp_pass1_kernel(aggr_ref, h_ref, w1_ref, b1_ref, z_ref, s1_ref):
    """z = (aggr + h) @ W1 + b1 (bf16 MXU, f32 acc); accumulate BN column sum / sumsq."""
    i = pl.program_id(0)

    @pl.when(i == 0)
    def _():
        s1_ref[...] = jnp.zeros_like(s1_ref)

    out = (aggr_ref[...] + h_ref[...]).astype(jnp.bfloat16)     # GENConv root/self term
    z = jnp.dot(out, w1_ref[...], preferred_element_type=jnp.float32) + b1_ref[...]
    z_ref[...] = z
    s1_ref[...] += jnp.concatenate(
        [jnp.sum(z, axis=0, keepdims=True),
         jnp.sum(z * z, axis=0, keepdims=True)], axis=0)


def mlp_pass2_kernel(s1_ref, z_ref, g1_ref, be1_ref, w2_ref, b2_ref,
                     conv_ref, s2_ref, *, n_nodes):
    """BN (batch stats) -> ReLU -> conv = z @ W2 + b2; accumulate PairNorm stats."""
    i = pl.program_id(0)

    @pl.when(i == 0)
    def _():
        s2_ref[...] = jnp.zeros_like(s2_ref)

    inv_n = 1.0 / float(n_nodes)
    mu = s1_ref[0:1, :] * inv_n
    var = s1_ref[1:2, :] * inv_n - mu * mu                       # biased variance (BN train)
    z = (z_ref[...] - mu) * jax.lax.rsqrt(var + BN_EPS) * g1_ref[...] + be1_ref[...]
    z = jnp.maximum(z, 0.0).astype(jnp.bfloat16)
    conv = jnp.dot(z, w2_ref[...], preferred_element_type=jnp.float32) + b2_ref[...]
    conv_ref[...] = conv
    s2_ref[...] += jnp.concatenate(
        [jnp.sum(conv, axis=0, keepdims=True),
         jnp.sum(conv * conv, axis=0, keepdims=True)], axis=0)


def mlp_pass3_kernel(s2_ref, conv_ref, h_ref, o_ref, *, n_nodes, residual):
    """PairNorm apply -> ReLU (+ residual)."""
    inv_n = 1.0 / float(n_nodes)
    mu = s2_ref[0:1, :] * inv_n
    # mean per-node squared norm of the centered conv: sum_d (E[conv_d^2] - mu_d^2)
    mean_sq = jnp.sum(s2_ref[1:2, :] * inv_n - mu * mu, keepdims=True)   # (1,1)
    c = conv_ref[...] - mu
    pn = c * jax.lax.rsqrt(PAIRNORM_EPS + mean_sq)
    act = jnp.maximum(pn, 0.0)
    if residual:
        o_ref[...] = act + h_ref[...]
    else:
        o_ref[...] = act


def gen_mlp_pairnorm(aggr, h, p, *, residual):
    n, d = h.shape
    tm = _tile(n, DST_TILE)
    vmem = _vmem_limit_bytes()
    w1 = p["w1"].astype(jnp.bfloat16)
    w2 = p["w2"].astype(jnp.bfloat16)

    # Pass 1: first matmul + BN batch-stat accumulation over node tiles ("arbitrary").
    z, s1 = pl.pallas_call(
        mlp_pass1_kernel,
        out_shape=(jax.ShapeDtypeStruct((n, 2 * d), jnp.float32),
                   jax.ShapeDtypeStruct((2, 2 * d), jnp.float32)),
        grid=(n // tm,),
        in_specs=[
            pl.BlockSpec((tm, d), lambda i: (i, 0)),
            pl.BlockSpec((tm, d), lambda i: (i, 0)),
            pl.BlockSpec((d, 2 * d), lambda i: (0, 0)),
            pl.BlockSpec((1, 2 * d), lambda i: (0, 0)),
        ],
        out_specs=[pl.BlockSpec((tm, 2 * d), lambda i: (i, 0)),
                   pl.BlockSpec((2, 2 * d), lambda i: (0, 0))],
        compiler_params=pltpu.CompilerParams(
            dimension_semantics=("arbitrary",), vmem_limit_bytes=vmem),
    )(aggr, h, w1, p["b1"])

    # Pass 2: BN -> ReLU -> second matmul + PairNorm stat accumulation ("arbitrary").
    conv, s2 = pl.pallas_call(
        functools.partial(mlp_pass2_kernel, n_nodes=n),
        out_shape=(jax.ShapeDtypeStruct((n, d), jnp.float32),
                   jax.ShapeDtypeStruct((2, d), jnp.float32)),
        grid=(n // tm,),
        in_specs=[
            pl.BlockSpec((2, 2 * d), lambda i: (0, 0)),
            pl.BlockSpec((tm, 2 * d), lambda i: (i, 0)),
            pl.BlockSpec((1, 2 * d), lambda i: (0, 0)),
            pl.BlockSpec((1, 2 * d), lambda i: (0, 0)),
            pl.BlockSpec((2 * d, d), lambda i: (0, 0)),
            pl.BlockSpec((1, d), lambda i: (0, 0)),
        ],
        out_specs=[pl.BlockSpec((tm, d), lambda i: (i, 0)),
                   pl.BlockSpec((2, d), lambda i: (0, 0))],
        compiler_params=pltpu.CompilerParams(
            dimension_semantics=("arbitrary",), vmem_limit_bytes=vmem),
    )(s1, z, p["g1"], p["be1"], w2, p["b2"])

    # Pass 3: PairNorm apply + ReLU (+residual), fully "parallel" over node tiles.
    return pl.pallas_call(
        functools.partial(mlp_pass3_kernel, n_nodes=n, residual=residual),
        out_shape=jax.ShapeDtypeStruct((n, d), jnp.float32),
        grid=(n // tm,),
        in_specs=[
            pl.BlockSpec((2, d), lambda i: (0, 0)),
            pl.BlockSpec((tm, d), lambda i: (i, 0)),
            pl.BlockSpec((tm, d), lambda i: (i, 0)),
        ],
        out_specs=pl.BlockSpec((tm, d), lambda i: (i, 0)),
        compiler_params=pltpu.CompilerParams(
            dimension_semantics=("parallel",), vmem_limit_bytes=vmem),
    )(s2, conv, h)


# ----------------------------------------------------------------------------
# Full GraNA.forward
# ----------------------------------------------------------------------------
def grana_forward(x_protein, adj_bf16, pe, params):
    # adj_bf16: dense adjacency (edge multiplicities), built/stored in bf16 ONCE outside
    # this function (per perf review: avoid paying a 6*N^2-byte cast every forward).
    # TODO(synk): fuse all layers into one kernel (stacked [L,...] weights) so adj is
    #             DMA'd from HBM once per forward instead of once per layer.
    h = embed(x_protein, params["w_lin"], params["b_lin"], pe)
    d = h.shape[1]
    for li, layer in enumerate(params["layers"]):
        rhs = messages(h, layer["t"])
        aggr = aggregate(adj_bf16, rhs, d)
        h = gen_mlp_pairnorm(aggr, h, layer, residual=(li > 0))
    return h    # == x['protein'] of the hetero output dict


# ----------------------------------------------------------------------------
# Pure-JAX reference (mirrors the PyTorch math, all f32) for the sanity check.
# ----------------------------------------------------------------------------
def _gen_layer_ref(h, a, p, residual):
    m = jnp.maximum(h, 0.0) + MSG_EPS
    e = jnp.exp(p["t"] * m)
    num, den = a @ (e * m), a @ e
    aggr = jnp.where(den > 0, num / den, 0.0)
    out = aggr + h
    z = out @ p["w1"] + p["b1"]
    mu = z.mean(0, keepdims=True)
    var = ((z - mu) ** 2).mean(0, keepdims=True)
    z = jnp.maximum((z - mu) / jnp.sqrt(var + BN_EPS) * p["g1"] + p["be1"], 0.0)
    conv = z @ p["w2"] + p["b2"]
    c = conv - conv.mean(0, keepdims=True)
    pn = c / jnp.sqrt(PAIRNORM_EPS + (c * c).sum(-1).mean())
    act = jnp.maximum(pn, 0.0)
    return act + h if residual else act


def _grana_forward_ref(x_protein, adj, pe, params):
    y = x_protein @ params["w_lin"] + params["b_lin"]
    h = jnp.where(y > 0, y, LEAKY_SLOPE * y) + pe
    h = _gen_layer_ref(h, adj, params["layers"][0], residual=False)
    for layer in range(1, len(params["layers"])):
        h = _gen_layer_ref(h, adj, params["layers"][layer], residual=True)
    return h


def init_params(key, in_dim, hidden_dim, num_layers):
    k_lin, k_layers = jax.random.split(key)
    params = {
        "w_lin": jax.random.normal(k_lin, (in_dim, hidden_dim), jnp.float32)
        / jnp.sqrt(float(in_dim)),
        "b_lin": jnp.zeros((1, hidden_dim), jnp.float32),
        "layers": [],
    }
    for layer in range(num_layers):
        k1, k2 = jax.random.split(jax.random.fold_in(k_layers, layer))
        params["layers"].append({
            "t": jnp.ones((1, 1), jnp.float32),                     # GENConv learn_t init
            "w1": jax.random.normal(k1, (hidden_dim, 2 * hidden_dim), jnp.float32)
            / jnp.sqrt(float(hidden_dim)),
            "b1": jnp.zeros((1, 2 * hidden_dim), jnp.float32),
            "g1": jnp.ones((1, 2 * hidden_dim), jnp.float32),        # BN gamma
            "be1": jnp.zeros((1, 2 * hidden_dim), jnp.float32),      # BN beta
            "w2": jax.random.normal(k2, (2 * hidden_dim, hidden_dim), jnp.float32)
            / jnp.sqrt(float(2 * hidden_dim)),
            "b2": jnp.zeros((1, hidden_dim), jnp.float32),
        })
    return params


if __name__ == "__main__":
    # Lane-dense, multi-tile shapes: hidden=128 (full lane width), N=2048 nodes ->
    # aggregation grid (4 dst tiles x 2 src tiles) exercising the resident-rhs slice
    # path, and 4 node tiles exercising the cross-tile BN/PairNorm stat accumulation.
    N, IN_DIM, HIDDEN, NUM_LAYERS, NUM_EDGES = 2048, 256, 128, 3, 8192

    key = jax.random.PRNGKey(0)
    k_x, k_pe, k_src, k_dst, k_p = jax.random.split(key, 5)

    x_protein = jax.random.normal(k_x, (N, IN_DIM), jnp.float32)
    pe = 0.1 * jax.random.normal(k_pe, (N, HIDDEN), jnp.float32)
    src = jax.random.randint(k_src, (NUM_EDGES,), 0, N)
    dst = jax.random.randint(k_dst, (NUM_EDGES,), 0, N)
    edge_index = jnp.stack([src, dst])  # [2, E], row0=source, row1=target

    # dense adjacency for edge type ('protein','to','protein'); counts parallel edges
    adj = jnp.zeros((N, N), jnp.float32).at[edge_index[1], edge_index[0]].add(1.0)
    # bf16 is exact for integer edge counts up to 256
    assert float(jnp.max(adj)) <= 256.0
    # Cast ONCE outside the forward pass (the forward consumes the bf16 adjacency).
    adj_bf16 = adj.astype(jnp.bfloat16)

    params = init_params(k_p, IN_DIM, HIDDEN, NUM_LAYERS)

    out = grana_forward(x_protein, adj_bf16, pe, params)
    out = jax.block_until_ready(out)

    ref = _grana_forward_ref(x_protein, adj, pe, params)

    assert out.shape == (N, HIDDEN)
    assert bool(jnp.all(jnp.isfinite(out)))
    max_diff = float(jnp.max(jnp.abs(out - ref)))
    assert bool(jnp.allclose(out, ref, rtol=5e-2, atol=5e-2)), f"max abs diff {max_diff}"
    print("KERNEL_OK")
</pallas_src>

<mosaic_0001>
module attributes {stable_mosaic.version = 11 : i64} {
  func.func @embed_kernel(%arg0: i32, %arg1: memref<512x256xf32, #tpu.memory_space<vmem>>, %arg2: memref<256x128xf32, #tpu.memory_space<vmem>>, %arg3: memref<1x128xf32, #tpu.memory_space<vmem>>, %arg4: memref<512x128xf32, #tpu.memory_space<vmem>>, %arg5: memref<512x128xf32, #tpu.memory_space<vmem>>) attributes {dimension_semantics = [#tpu.dimension_semantics<parallel>], iteration_bounds = array<i64: 4>, scalar_prefetch = 0 : i64, scratch_operands = 0 : i64, tpu.core_type = #tpu.core_type<tc>, window_params = [{transform_indices = @transform_0, window_bounds = array<i64: 512, 256>}, {pipeline_mode = #tpu.pipeline_mode<synchronous>, transform_indices = @transform_1, window_bounds = array<i64: 256, 128>}, {pipeline_mode = #tpu.pipeline_mode<synchronous>, transform_indices = @transform_2, window_bounds = array<i64: 1, 128>}, {transform_indices = @transform_3, window_bounds = array<i64: 512, 128>}, {transform_indices = @transform_4, window_bounds = array<i64: 512, 128>}]} {
    %c0 = arith.constant 0 : index
    %c0_0 = arith.constant 0 : index
    %0 = vector.load %arg1[%c0, %c0_0] : memref<512x256xf32, #tpu.memory_space<vmem>>, vector<512x256xf32>
    %c0_1 = arith.constant 0 : index
    %c0_2 = arith.constant 0 : index
    %1 = vector.load %arg2[%c0_1, %c0_2] : memref<256x128xf32, #tpu.memory_space<vmem>>, vector<256x128xf32>
    %cst = arith.constant dense<0.000000e+00> : vector<512x128xf32>
    %2 = tpu.matmul %0, %1, %cst {dimension_numbers = #tpu.dot_dimension_numbers<[1], [0], [0], [1], [0, 0, 1, 1], [], []>} : vector<512x256xf32>, vector<256x128xf32>, vector<512x128xf32> -> vector<512x128xf32>
    %c0_3 = arith.constant 0 : index
    %c0_4 = arith.constant 0 : index
    %3 = vector.load %arg3[%c0_3, %c0_4] : memref<1x128xf32, #tpu.memory_space<vmem>>, vector<1x128xf32>
    %4 = vector.broadcast %3 : vector<1x128xf32> to vector<512x128xf32>
    %5 = arith.addf %2, %4 : vector<512x128xf32>
    %cst_5 = arith.constant 0.000000e+00 : f32
    %6 = vector.broadcast %cst_5 : f32 to vector<512x128xf32>
    %7 = arith.cmpf ogt, %5, %6 : vector<512x128xf32>
    %cst_6 = arith.constant 0.00999999977 : f32
    %8 = vector.broadcast %cst_6 : f32 to vector<512x128xf32>
    %9 = arith.mulf %8, %5 : vector<512x128xf32>
    %10 = arith.select %7, %5, %9 : vector<512x128xi1>, vector<512x128xf32>
    %c0_7 = arith.constant 0 : index
    %c0_8 = arith.constant 0 : index
    %11 = vector.load %arg4[%c0_7, %c0_8] : memref<512x128xf32, #tpu.memory_space<vmem>>, vector<512x128xf32>
    %12 = arith.addf %10, %11 : vector<512x128xf32>
    %c0_9 = arith.constant 0 : index
    %c0_10 = arith.constant 0 : index
    %13 = vector.load %arg5[%c0_9, %c0_10] : memref<512x128xf32, #tpu.memory_space<vmem>>, vector<512x128xf32>
    tpu.vector_store %arg5[%c0_9, %c0_10], %12 {strides = array<i32>} : memref<512x128xf32, #tpu.memory_space<vmem>>, vector<512x128xf32>,
    return
  }
  func.func @transform_0(%arg0: i32) -> (i32, i32) {
    %c0_i32 = arith.constant 0 : i32
    %c0_i32_0 = arith.constant 0 : i32
    return %arg0, %c0_i32 : i32, i32
  }
  func.func @transform_1(%arg0: i32) -> (i32, i32) {
    %c0_i32 = arith.constant 0 : i32
    %c0_i32_0 = arith.constant 0 : i32
    %c0_i32_1 = arith.constant 0 : i32
    return %c0_i32, %c0_i32_0 : i32, i32
  }
  func.func @transform_2(%arg0: i32) -> (i32, i32) {
    %c0_i32 = arith.constant 0 : i32
    %c0_i32_0 = arith.constant 0 : i32
    %c0_i32_1 = arith.constant 0 : i32
    return %c0_i32, %c0_i32_0 : i32, i32
  }
  func.func @transform_3(%arg0: i32) -> (i32, i32) {
    %c0_i32 = arith.constant 0 : i32
    %c0_i32_0 = arith.constant 0 : i32
    return %arg0, %c0_i32 : i32, i32
  }
  func.func @transform_4(%arg0: i32) -> (i32, i32) {
    %c0_i32 = arith.constant 0 : i32
    %c0_i32_0 = arith.constant 0 : i32
    return %arg0, %c0_i32 : i32, i32
  }
}

</mosaic_0001>

<llo_original>
// kernel: tpu_custom_call.1
$region0: #{tpu_custom_call.1}
  #allocation0 [shape = 'u32[]', space=smem, size = 0x4, offset = 0x4, fixed_abs, tag = 'smem constant byte address 0x4 - core index']
  #allocation1 [shape = 'u32[72,128]{1,0:T(1,128)}', space=vmem, size = 0x9000, scoped, tag = 'internal scratch']
  %s0 = inlined_call_operand.hbm [shape: f32[2048,256], index: 0, kind: input, shape index: {}]
  %s1 = inlined_call_operand.hbm [shape: f32[256,128], index: 1, kind: input, shape index: {}]
  %s2 = inlined_call_operand.hbm [shape: f32[1,128], index: 2, kind: input, shape index: {}]
  %s3 = inlined_call_operand.hbm [shape: f32[2048,128], index: 3, kind: input, shape index: {}]
  %s4 = inlined_call_operand.hbm [shape: f32[2048,128], index: 4, kind: output, shape index: {}]
  %s5 = sld [smem:[#allocation0]]
  $region65: #{tpu_custom_call.1} parent=0
    _
  %s7 = ssub.s32 1, %s5
  %s8 = scalar_select 0, %s7, %s5
  $region1: #{tpu_custom_call.1} parent=0
    #allocation2 [shape = 'u8[1048576]{0}', space=vmem, size = 0x100000, scoped, tag = 'input window, operand 0']
    #allocation3 [shape = 's32[2]{0}', space=sflag, size = 0x8, scoped, tag = 'scoped memory for tpu_custom_call.1']
    #allocation4 [shape = 's32[2]{0}', space=sflag, size = 0x8, scoped, tag = 'scoped memory for tpu_custom_call.1']
    #allocation5 [shape = 'u8[131072]{0}', space=vmem, size = 0x20000, scoped, tag = 'input window, operand 1, single buffered']
    #allocation6 [shape = 's32[1]{0}', space=sflag, size = 0x4, scoped, tag = 'scoped memory for tpu_custom_call.1']
    #allocation7 [shape = 'u8[512]{0}', space=vmem, size = 0x400, scoped, tag = 'input window, operand 2, single buffered']
    #allocation8 [shape = 'u8[524288]{0}', space=vmem, size = 0x80000, scoped, tag = 'input window, operand 3']
    #allocation9 [shape = 's32[2]{0}', space=sflag, size = 0x8, scoped, tag = 'scoped memory for tpu_custom_call.1']
    #allocation10 [shape = 'u8[524288]{0}', space=vmem, size = 0x80000, scoped, tag = 'output window, operand 0']
    %9 = vsyncpa [#allocation3], 0
    %s10 = scalar_lea.sflag [#allocation3], 1
    %11 = vsyncpa %s10, 0
    %12 = vsyncpa [#allocation6], 0
    %13 = vsyncpa [#allocation9], 0
    %s14 = scalar_lea.sflag [#allocation9], 1
    %15 = vsyncpa %s14, 0
    %16 = vsyncpa [#allocation4], 0
    %s17 = scalar_lea.sflag [#allocation4], 1
    %18 = vsyncpa %s17, 0
    loop: start=0, step=1, limit=6
    $region2: #{tpu_custom_call.1} parent=1 // loop_pre_header
      _
    $region3: #{tpu_custom_call.1} parent=1 // loop_header
      %s20 = sphi 0, %s24
      %p21 = scmp.ge.s32.totalorder %s20, 6
      %s30 = sphi 0, %s32
      %s33 = sphi 0, %s30
      %s34 = sphi 0, %s33
      %s50 = sphi 0, %s34
      %s54 = sphi 0, %s54
      %s56 = sphi 0, %s54
      %s57 = sphi 0, %s56
      %s71 = sphi 0, %s57
      %s75 = sphi 0, %s75
      %s77 = sphi 0, %s75
      %s78 = sphi 0, %s77
      %s92 = sphi 0, %s78
      %s98 = sphi 0, %s100
      %s101 = sphi 0, %s98
      %s102 = sphi 0, %s101
      %s118 = sphi 0, %s102
      %s124 = sphi 0, %s126
      %s127 = sphi 0, %s124
      %s128 = sphi 0, %s127
      %s144 = sphi 0, %s128
    $region4: #{tpu_custom_call.1} parent=1 // loop_header_branch
      %23 = sbr.rel (%p21) target = $region8
    $region5: #{tpu_custom_call.1} parent=1 // loop_body
      %s25 = ssub.s32 %s20, 1
      %s26 = ssub.s32 %s20, 2
      %s27 = sadd.s32 %s20, 1
      %s28 = ssub.s32 %s20, %s27
      %p29 = scmp.eq.s32.totalorder %s28, 0
      %s31 = sadd.s32 %s30, 1
      %s32 = scalar_select %p29, %s30, %s31
      %p35 = pneg %p29
      %p36 = scmp.eq.s32.totalorder %s20, 3
      %p37 = por %p35, %p36
      %p38 = scmp.ne.s32.totalorder %s30, %s33
      %p39 = scmp.eq.s32.totalorder %s20, 0
      %p40 = por %p38, %p39
      %p41 = scmp.ne.s32.totalorder %s30, %s33
      %p42 = scmp.eq.s32.totalorder %s25, 3
      %p43 = por %p41, %p42
      %p44 = scmp.ne.s32.totalorder %s33, %s34
      %p45 = scmp.eq.s32.totalorder %s25, 0
      %p46 = por %p44, %p45
      %p47 = scmp.ne.s32.totalorder %s33, %s34
      %p48 = scmp.eq.s32.totalorder %s26, 3
      %p49 = por %p47, %p48
      %p51 = scmp.ne.s32.totalorder %s34, %s50
      %p52 = scmp.eq.s32.totalorder %s26, 0
      %p53 = por %p51, %p52
      %s55 = sadd.s32 %s54, 1
      %p58 = scmp.eq.s32.totalorder %s20, 3
      %p59 = scmp.ne.s32.totalorder %s54, %s56
      %p60 = scmp.eq.s32.totalorder %s20, 0
      %p61 = por %p59, %p60
      %p62 = scmp.ne.s32.totalorder %s54, %s56
      %p63 = scmp.eq.s32.totalorder %s25, 3
      %p64 = por %p62, %p63
      %p65 = scmp.ne.s32.totalorder %s56, %s57
      %p66 = scmp.eq.s32.totalorder %s25, 0
      %p67 = por %p65, %p66
      %p68 = scmp.ne.s32.totalorder %s56, %s57
      %p69 = scmp.eq.s32.totalorder %s26, 3
      %p70 = por %p68, %p69
      %p72 = scmp.ne.s32.totalorder %s57, %s71
      %p73 = scmp.eq.s32.totalorder %s26, 0
      %p74 = por %p72, %p73
      %s76 = sadd.s32 %s75, 1
      %p79 = scmp.eq.s32.totalorder %s20, 3
      %p80 = scmp.ne.s32.totalorder %s75, %s77
      %p81 = scmp.eq.s32.totalorder %s20, 0
      %p82 = por %p80, %p81
      %p83 = scmp.ne.s32.totalorder %s75, %s77
      %p84 = scmp.eq.s32.totalorder %s25, 3
      %p85 = por %p83, %p84
      %p86 = scmp.ne.s32.totalorder %s77, %s78
      %p87 = scmp.eq.s32.totalorder %s25, 0
      %p88 = por %p86, %p87
      %p89 = scmp.ne.s32.totalorder %s77, %s78
      %p90 = scmp.eq.s32.totalorder %s26, 3
      %p91 = por %p89, %p90
      %p93 = scmp.ne.s32.totalorder %s78, %s92
      %p94 = scmp.eq.s32.totalorder %s26, 0
      %p95 = por %p93, %p94
      %s96 = ssub.s32 %s20, %s27
      %p97 = scmp.eq.s32.totalorder %s96, 0
      %s99 = sadd.s32 %s98, 1
      %s100 = scalar_select %p97, %s98, %s99
      %p103 = pneg %p97
      %p104 = scmp.eq.s32.totalorder %s20, 3
      %p105 = por %p103, %p104
      %p106 = scmp.ne.s32.totalorder %s98, %s101
      %p107 = scmp.eq.s32.totalorder %s20, 0
      %p108 = por %p106, %p107
      %p109 = scmp.ne.s32.totalorder %s98, %s101
      %p110 = scmp.eq.s32.totalorder %s25, 3
      %p111 = por %p109, %p110
      %p112 = scmp.ne.s32.totalorder %s101, %s102
      %p113 = scmp.eq.s32.totalorder %s25, 0
      %p114 = por %p112, %p113
      %p115 = scmp.ne.s32.totalorder %s101, %s102
      %p116 = scmp.eq.s32.totalorder %s26, 3
      %p117 = por %p115, %p116
      %p119 = scmp.ne.s32.totalorder %s102, %s118
      %p120 = scmp.eq.s32.totalorder %s26, 0
      %p121 = por %p119, %p120
      %s122 = ssub.s32 %s20, %s27
      %p123 = scmp.eq.s32.totalorder %s122, 0
      %s125 = sadd.s32 %s124, 1
      %s126 = scalar_select %p123, %s124, %s125
      %p129 = pneg %p123
      %p130 = scmp.eq.s32.totalorder %s20, 3
      %p131 = por %p129, %p130
      %p132 = scmp.ne.s32.totalorder %s124, %s127
      %p133 = scmp.eq.s32.totalorder %s20, 0
      %p134 = por %p132, %p133
      %p135 = scmp.ne.s32.totalorder %s124, %s127
      %p136 = scmp.eq.s32.totalorder %s25, 3
      %p137 = por %p135, %p136
      %p138 = scmp.ne.s32.totalorder %s127, %s128
      %p139 = scmp.eq.s32.totalorder %s25, 0
      %p140 = por %p138, %p139
      %p141 = scmp.ne.s32.totalorder %s127, %s128
      %p142 = scmp.eq.s32.totalorder %s26, 3
      %p143 = por %p141, %p142
      %p145 = scmp.ne.s32.totalorder %s128, %s144
      %p146 = scmp.eq.s32.totalorder %s26, 0
      %p147 = por %p145, %p146
      %p148 = scmp.le.s32.totalorder 1, %s20
      %p149 = scmp.lt.s32.totalorder %s20, 5
      %p150 = pnand %p148, %p149
      %p151 = pneg %p150
      // Predicated region
      $region9: #{tpu_custom_call.1} parent=5 // pred_check
        _
      $region10: #{tpu_custom_call.1} parent=5 // pred_check_branch
        %153 = sbr.rel (%p150) target = $region12
      $region11: #{tpu_custom_call.1} parent=5 // pred_region
        %s154 = ssub.s32 %s20, 1
        // Predicated region
        $region13: #{tpu_custom_call.1} parent=11 // pred_check
          %p155 = pneg %p67
        $region14: #{tpu_custom_call.1} parent=11 // pred_check_branch
          %157 = sbr.rel (%p155) target = $region16
        $region15: #{tpu_custom_call.1} parent=11 // pred_region
          %159 = vsyncadd [#allocation6], 0
          %s160 = sshll.u32 %s1, 4
          %s161 = int_to_ptr.hbm [resolvable:$true] %s160
          %s162 = sshll.u32 [#allocation5], 4
          %s163 = int_to_ptr.vmem [resolvable:$true] %s162
          %168 = dma.hbm_to_vmem [thread:$0]  %s161, 4096, %s163, [#allocation6], 128, 128, 8
        $region16: #{tpu_custom_call.1} parent=11 // pred_fallthru
          _
        // Predicated region
        $region17: #{tpu_custom_call.1} parent=11 // pred_check
          %p169 = pneg %p88
        $region18: #{tpu_custom_call.1} parent=11 // pred_check_branch
          %171 = sbr.rel (%p169) target = $region20
        $region19: #{tpu_custom_call.1} parent=11 // pred_region
          %173 = vsyncadd [#allocation6], 0
          %s175 = sshll.u32 %s2, 4
          %s176 = int_to_ptr.hbm [resolvable:$true] %s175
          %s177 = sshll.u32 [#allocation7], 4
          %s178 = int_to_ptr.vmem [resolvable:$true] %s177
          %180 = dma.hbm_to_vmem [thread:$0]  %s176, 16, %s178, [#allocation6]
        $region20: #{tpu_custom_call.1} parent=11 // pred_fallthru
          _
      $region12: #{tpu_custom_call.1} parent=5 // pred_fallthru
        _
      %p181 = scmp.lt.s32.totalorder %s20, 4
      // Predicated region
      $region21: #{tpu_custom_call.1} parent=5 // pred_check
        %p182 = pneg %p181
      $region22: #{tpu_custom_call.1} parent=5 // pred_check_branch
        %184 = sbr.rel (%p182) target = $region24
      $region23: #{tpu_custom_call.1} parent=5 // pred_region
        // Predicated region
        $region25: #{tpu_custom_call.1} parent=23 // pred_check
          %p185 = pneg %p40
        $region26: #{tpu_custom_call.1} parent=23 // pred_check_branch
          %187 = sbr.rel (%p185) target = $region28
        $region27: #{tpu_custom_call.1} parent=23 // pred_region
          %s188 = sand.u32 %s30, 1
          %s189 = scalar_lea.sflag [#allocation3], %s188
          %s190 = sand.u32 %s30, 1
          %s191 = smul.addr %s190, 1024
          %s192 = scalar_lea.vmem [#allocation2], %s191
          %s193 = smul.u32 64, %s20
          %195 = vsyncadd %s189, 0
          %s196 = smul.addr %s193, 2
          %s197 = smul.addr %s196, 8
          %s198 = scalar_lea.hbm %s0, %s197
          %s199 = sshll.u32 %s198, 4
          %s200 = int_to_ptr.hbm [resolvable:$true] %s199
          %s201 = sshll.u32 %s192, 4
          %s202 = int_to_ptr.vmem [resolvable:$true] %s201
          %207 = dma.hbm_to_vmem [thread:$0]  %s200, 16384, %s202, %s189, 256, 256, 16
        $region28: #{tpu_custom_call.1} parent=23 // pred_fallthru
          _
        // Predicated region
        $region29: #{tpu_custom_call.1} parent=23 // pred_check
          %p208 = pneg %p108
        $region30: #{tpu_custom_call.1} parent=23 // pred_check_branch
          %210 = sbr.rel (%p208) target = $region32
        $region31: #{tpu_custom_call.1} parent=23 // pred_region
          %s211 = sand.u32 %s98, 1
          %s212 = scalar_lea.sflag [#allocation9], %s211
          %s213 = sand.u32 %s98, 1
          %s214 = smul.addr %s213, 512
          %s215 = scalar_lea.vmem [#allocation8], %s214
          %s216 = smul.u32 64, %s20
          %218 = vsyncadd %s212, 0
          %s219 = smul.addr %s216, 8
          %s220 = scalar_lea.hbm %s3, %s219
          %s221 = sshll.u32 %s220, 4
          %s222 = int_to_ptr.hbm [resolvable:$true] %s221
          %s223 = sshll.u32 %s215, 4
          %s224 = int_to_ptr.vmem [resolvable:$true] %s223
          %229 = dma.hbm_to_vmem [thread:$0]  %s222, 8192, %s224, %s212, 128, 128, 8
        $region32: #{tpu_custom_call.1} parent=23 // pred_fallthru
          _
      $region24: #{tpu_custom_call.1} parent=5 // pred_fallthru
        _
      %p230 = scmp.le.s32.totalorder 1, %s20
      %p231 = scmp.lt.s32.totalorder %s20, 5
      %p232 = pnand %p230, %p231
      %p233 = pneg %p232
      // Predicated region
      $region33: #{tpu_custom_call.1} parent=5 // pred_check
        _
      $region34: #{tpu_custom_call.1} parent=5 // pred_check_branch
        %235 = sbr.rel (%p232) target = $region36
      $region35: #{tpu_custom_call.1} parent=5 // pred_region
        %s236 = ssub.s32 %s20, 1
        %s237 = sand.u32 %s33, 1
        %s238 = scalar_lea.sflag [#allocation3], %s237
        %s239 = sand.u32 %s33, 1
        %s240 = smul.addr %s239, 1024
        %s241 = scalar_lea.vmem [#allocation2], %s240
        // Predicated region
        $region37: #{tpu_custom_call.1} parent=35 // pred_check
          %p242 = pneg %p46
        $region38: #{tpu_custom_call.1} parent=35 // pred_check_branch
          %244 = sbr.rel (%p242) target = $region40
        $region39: #{tpu_custom_call.1} parent=35 // pred_region
          %246 = dma.done %s238, 16384
        $region40: #{tpu_custom_call.1} parent=35 // pred_fallthru
          _
        // Predicated region
        $region41: #{tpu_custom_call.1} parent=35 // pred_check
          %p247 = pneg %p67
        $region42: #{tpu_custom_call.1} parent=35 // pred_check_branch
          %249 = sbr.rel (%p247) target = $region44
        $region43: #{tpu_custom_call.1} parent=35 // pred_region
          %251 = dma.done [#allocation6], 4096
        $region44: #{tpu_custom_call.1} parent=35 // pred_fallthru
          _
        // Predicated region
        $region45: #{tpu_custom_call.1} parent=35 // pred_check
          %p252 = pneg %p88
        $region46: #{tpu_custom_call.1} parent=35 // pred_check_branch
          %254 = sbr.rel (%p252) target = $region48
        $region47: #{tpu_custom_call.1} parent=35 // pred_region
          %256 = dma.done [#allocation6], 16
        $region48: #{tpu_custom_call.1} parent=35 // pred_fallthru
          _
        %s257 = sand.u32 %s101, 1
        %s258 = scalar_lea.sflag [#allocation9], %s257
        %s259 = sand.u32 %s101, 1
        %s260 = smul.addr %s259, 512
        %s261 = scalar_lea.vmem [#allocation8], %s260
        // Predicated region
        $region49: #{tpu_custom_call.1} parent=35 // pred_check
          %p262 = pneg %p114
        $region50: #{tpu_custom_call.1} parent=35 // pred_check_branch
          %264 = sbr.rel (%p262) target = $region52
        $region51: #{tpu_custom_call.1} parent=35 // pred_region
          %266 = dma.done %s258, 8192
        $region52: #{tpu_custom_call.1} parent=35 // pred_fallthru
          _
        %s267 = sand.u32 %s33, 1
        %s268 = scalar_lea.sflag [#allocation3], %s267
        %s269 = sand.u32 %s33, 1
        %s270 = smul.addr %s269, 1024
        %s271 = scalar_lea.vmem [#allocation2], %s270
        %p272 = pneg %p46
        %p273 = pneg %p43
        %p274 = pneg %p67
        %p275 = pneg %p64
        %p276 = pneg %p88
        %p277 = pneg %p85
        %s278 = sand.u32 %s101, 1
        %s279 = scalar_lea.sflag [#allocation9], %s278
        %s280 = sand.u32 %s101, 1
        %s281 = smul.addr %s280, 512
        %s282 = scalar_lea.vmem [#allocation8], %s281
        %p283 = pneg %p114
        %p284 = pneg %p111
        %p285 = pneg %p140
        %p286 = pneg %p137
        %s287 = sand.u32 %s127, 1
        %s288 = scalar_lea.sflag [#allocation4], %s287
        %s289 = sand.u32 %s127, 1
        %s290 = smul.addr %s289, 512
        %s291 = scalar_lea.vmem [#allocation10], %s290
        %s292 = smul.u32 64, %s25
        %s293 = smul.u32 64, %s25
        %s294 = smul.u32 64, %s25
        %v295 = vld [vmem:[%s241] sm:$0xff]
        %v296 = vld [vmem:[%s241 + $0x8] sm:$0xff]
        %v297 = vld [vmem:[%s241 + $0x10] sm:$0xff]
        %v298 = vld [vmem:[%s241 + $0x18] sm:$0xff]
        %v299 = vld [vmem:[%s241 + $0x20] sm:$0xff]
        %v300 = vld [vmem:[%s241 + $0x28] sm:$0xff]
        %v301 = vld [vmem:[%s241 + $0x30] sm:$0xff]
        %v302 = vld [vmem:[%s241 + $0x38] sm:$0xff]
        %v303 = vld [vmem:[%s241 + $0x40] sm:$0xff]
        %v304 = vld [vmem:[%s241 + $0x48] sm:$0xff]
        %v305 = vld [vmem:[%s241 + $0x50] sm:$0xff]
        %v306 = vld [vmem:[%s241 + $0x58] sm:$0xff]
        %v307 = vld [vmem:[%s241 + $0x60] sm:$0xff]
        %v308 = vld [vmem:[%s241 + $0x68] sm:$0xff]
        %v309 = vld [vmem:[%s241 + $0x70] sm:$0xff]
        %v310 = vld [vmem:[%s241 + $0x78] sm:$0xff]
        %v311 = vld [vmem:[%s241 + $0x80] sm:$0xff]
        %v312 = vld [vmem:[%s241 + $0x88] sm:$0xff]
        %v313 = vld [vmem:[%s241 + $0x90] sm:$0xff]
        %v314 = vld [vmem:[%s241 + $0x98] sm:$0xff]
        %v315 = vld [vmem:[%s241 + $0xa0] sm:$0xff]
        %v316 = vld [vmem:[%s241 + $0xa8] sm:$0xff]
        %v317 = vld [vmem:[%s241 + $0xb0] sm:$0xff]
        %v318 = vld [vmem:[%s241 + $0xb8] sm:$0xff]
        %v319 = vld [vmem:[%s241 + $0xc0] sm:$0xff]
        %v320 = vld [vmem:[%s241 + $0xc8] sm:$0xff]
        %v321 = vld [vmem:[%s241 + $0xd0] sm:$0xff]
        %v322 = vld [vmem:[%s241 + $0xd8] sm:$0xff]
        %v323 = vld [vmem:[%s241 + $0xe0] sm:$0xff]
        %v324 = vld [vmem:[%s241 + $0xe8] sm:$0xff]
        %v325 = vld [vmem:[%s241 + $0xf0] sm:$0xff]
        %v326 = vld [vmem:[%s241 + $0xf8] sm:$0xff]
        %v327 = vld [vmem:[%s241 + $0x100] sm:$0xff]
        %v328 = vld [vmem:[%s241 + $0x108] sm:$0xff]
        %v329 = vld [vmem:[%s241 + $0x110] sm:$0xff]
        %v330 = vld [vmem:[%s241 + $0x118] sm:$0xff]
        %v331 = vld [vmem:[%s241 + $0x120] sm:$0xff]
        %v332 = vld [vmem:[%s241 + $0x128] sm:$0xff]
        %v333 = vld [vmem:[%s241 + $0x130] sm:$0xff]
        %v334 = vld [vmem:[%s241 + $0x138] sm:$0xff]
        %v335 = vld [vmem:[%s241 + $0x140] sm:$0xff]
        %v336 = vld [vmem:[%s241 + $0x148] sm:$0xff]
        %v337 = vld [vmem:[%s241 + $0x150] sm:$0xff]
        %v338 = vld [vmem:[%s241 + $0x158] sm:$0xff]
        %v339 = vld [vmem:[%s241 + $0x160] sm:$0xff]
        %v340 = vld [vmem:[%s241 + $0x168] sm:$0xff]
        %v341 = vld [vmem:[%s241 + $0x170] sm:$0xff]
        %v342 = vld [vmem:[%s241 + $0x178] sm:$0xff]
        %v343 = vld [vmem:[%s241 + $0x180] sm:$0xff]
        %v344 = vld [vmem:[%s241 + $0x188] sm:$0xff]
        %v345 = vld [vmem:[%s241 + $0x190] sm:$0xff]
        %v346 = vld [vmem:[%s241 + $0x198] sm:$0xff]
        %v347 = vld [vmem:[%s241 + $0x1a0] sm:$0xff]
        %v348 = vld [vmem:[%s241 + $0x1a8] sm:$0xff]
        %v349 = vld [vmem:[%s241 + $0x1b0] sm:$0xff]
        %v350 = vld [vmem:[%s241 + $0x1b8] sm:$0xff]
        %v351 = vld [vmem:[%s241 + $0x1c0] sm:$0xff]
        %v352 = vld [vmem:[%s241 + $0x1c8] sm:$0xff]
        %v353 = vld [vmem:[%s241 + $0x1d0] sm:$0xff]
        %v354 = vld [vmem:[%s241 + $0x1d8] sm:$0xff]
        %v355 = vld [vmem:[%s241 + $0x1e0] sm:$0xff]
        %v356 = vld [vmem:[%s241 + $0x1e8] sm:$0xff]
        %v357 = vld [vmem:[%s241 + $0x1f0] sm:$0xff]
        %v358 = vld [vmem:[%s241 + $0x1f8] sm:$0xff]
        %v359 = vld [vmem:[%s241 + $0x200] sm:$0xff]
        %v360 = vld [vmem:[%s241 + $0x208] sm:$0xff]
        %v361 = vld [vmem:[%s241 + $0x210] sm:$0xff]
        %v362 = vld [vmem:[%s241 + $0x218] sm:$0xff]
        %v363 = vld [vmem:[%s241 + $0x220] sm:$0xff]
        %v364 = vld [vmem:[%s241 + $0x228] sm:$0xff]
        %v365 = vld [vmem:[%s241 + $0x230] sm:$0xff]
        %v366 = vld [vmem:[%s241 + $0x238] sm:$0xff]
        %v367 = vld [vmem:[%s241 + $0x240] sm:$0xff]
        %v368 = vld [vmem:[%s241 + $0x248] sm:$0xff]
        %v369 = vld [vmem:[%s241 + $0x250] sm:$0xff]
        %v370 = vld [vmem:[%s241 + $0x258] sm:$0xff]
        %v371 = vld [vmem:[%s241 + $0x260] sm:$0xff]
        %v372 = vld [vmem:[%s241 + $0x268] sm:$0xff]
        %v373 = vld [vmem:[%s241 + $0x270] sm:$0xff]
        %v374 = vld [vmem:[%s241 + $0x278] sm:$0xff]
        %v375 = vld [vmem:[%s241 + $0x280] sm:$0xff]
        %v376 = vld [vmem:[%s241 + $0x288] sm:$0xff]
        %v377 = vld [vmem:[%s241 + $0x290] sm:$0xff]
        %v378 = vld [vmem:[%s241 + $0x298] sm:$0xff]
        %v379 = vld [vmem:[%s241 + $0x2a0] sm:$0xff]
        %v380 = vld [vmem:[%s241 + $0x2a8] sm:$0xff]
        %v381 = vld [vmem:[%s241 + $0x2b0] sm:$0xff]
        %v382 = vld [vmem:[%s241 + $0x2b8] sm:$0xff]
        %v383 = vld [vmem:[%s241 + $0x2c0] sm:$0xff]
        %v384 = vld [vmem:[%s241 + $0x2c8] sm:$0xff]
        %v385 = vld [vmem:[%s241 + $0x2d0] sm:$0xff]
        %v386 = vld [vmem:[%s241 + $0x2d8] sm:$0xff]
        %v387 = vld [vmem:[%s241 + $0x2e0] sm:$0xff]
        %v388 = vld [vmem:[%s241 + $0x2e8] sm:$0xff]
        %v389 = vld [vmem:[%s241 + $0x2f0] sm:$0xff]
        %v390 = vld [vmem:[%s241 + $0x2f8] sm:$0xff]
        %v391 = vld [vmem:[%s241 + $0x300] sm:$0xff]
        %v392 = vld [vmem:[%s241 + $0x308] sm:$0xff]
        %v393 = vld [vmem:[%s241 + $0x310] sm:$0xff]
        %v394 = vld [vmem:[%s241 + $0x318] sm:$0xff]
        %v395 = vld [vmem:[%s241 + $0x320] sm:$0xff]
        %v396 = vld [vmem:[%s241 + $0x328] sm:$0xff]
        %v397 = vld [vmem:[%s241 + $0x330] sm:$0xff]
        %v398 = vld [vmem:[%s241 + $0x338] sm:$0xff]
        %v399 = vld [vmem:[%s241 + $0x340] sm:$0xff]
        %v400 = vld [vmem:[%s241 + $0x348] sm:$0xff]
        %v401 = vld [vmem:[%s241 + $0x350] sm:$0xff]
        %v402 = vld [vmem:[%s241 + $0x358] sm:$0xff]
        %v403 = vld [vmem:[%s241 + $0x360] sm:$0xff]
        %v404 = vld [vmem:[%s241 + $0x368] sm:$0xff]
        %v405 = vld [vmem:[%s241 + $0x370] sm:$0xff]
        %v406 = vld [vmem:[%s241 + $0x378] sm:$0xff]
        %v407 = vld [vmem:[%s241 + $0x380] sm:$0xff]
        %v408 = vld [vmem:[%s241 + $0x388] sm:$0xff]
        %v409 = vld [vmem:[%s241 + $0x390] sm:$0xff]
        %v410 = vld [vmem:[%s241 + $0x398] sm:$0xff]
        %v411 = vld [vmem:[%s241 + $0x3a0] sm:$0xff]
        %v412 = vld [vmem:[%s241 + $0x3a8] sm:$0xff]
        %v413 = vld [vmem:[%s241 + $0x3b0] sm:$0xff]
        %v414 = vld [vmem:[%s241 + $0x3b8] sm:$0xff]
        %v415 = vld [vmem:[%s241 + $0x3c0] sm:$0xff]
        %v416 = vld [vmem:[%s241 + $0x3c8] sm:$0xff]
        %v417 = vld [vmem:[%s241 + $0x3d0] sm:$0xff]
        %v418 = vld [vmem:[%s241 + $0x3d8] sm:$0xff]
        %v419 = vld [vmem:[%s241 + $0x3e0] sm:$0xff]
        %v420 = vld [vmem:[%s241 + $0x3e8] sm:$0xff]
        %v421 = vld [vmem:[%s241 + $0x3f0] sm:$0xff]
        %v422 = vld [vmem:[%s241 + $0x3f8] sm:$0xff]
        %v423 = vld [vmem:[#allocation5] sm:$0xff]
        %v424 = vld [vmem:[#allocation5 + $0x8] sm:$0xff]
        %v425 = vld [vmem:[#allocation5 + $0x10] sm:$0xff]
        %v426 = vld [vmem:[#allocation5 + $0x18] sm:$0xff]
        %v427 = vld [vmem:[#allocation5 + $0x20] sm:$0xff]
        %v428 = vld [vmem:[#allocation5 + $0x28] sm:$0xff]
        %v429 = vld [vmem:[#allocation5 + $0x30] sm:$0xff]
        %v430 = vld [vmem:[#allocation5 + $0x38] sm:$0xff]
        %v431 = vld [vmem:[#allocation5 + $0x40] sm:$0xff]
        %v432 = vld [vmem:[#allocation5 + $0x48] sm:$0xff]
        %v433 = vld [vmem:[#allocation5 + $0x50] sm:$0xff]
        %v434 = vld [vmem:[#allocation5 + $0x58] sm:$0xff]
        %v435 = vld [vmem:[#allocation5 + $0x60] sm:$0xff]
        %v436 = vld [vmem:[#allocation5 + $0x68] sm:$0xff]
        %v437 = vld [vmem:[#allocation5 + $0x70] sm:$0xff]
        %v438 = vld [vmem:[#allocation5 + $0x78] sm:$0xff]
        %v439 = vld [vmem:[#allocation5 + $0x80] sm:$0xff]
        %v440 = vld [vmem:[#allocation5 + $0x88] sm:$0xff]
        %v441 = vld [vmem:[#allocation5 + $0x90] sm:$0xff]
        %v442 = vld [vmem:[#allocation5 + $0x98] sm:$0xff]
        %v443 = vld [vmem:[#allocation5 + $0xa0] sm:$0xff]
        %v444 = vld [vmem:[#allocation5 + $0xa8] sm:$0xff]
        %v445 = vld [vmem:[#allocation5 + $0xb0] sm:$0xff]
        %v446 = vld [vmem:[#allocation5 + $0xb8] sm:$0xff]
        %v447 = vld [vmem:[#allocation5 + $0xc0] sm:$0xff]
        %v448 = vld [vmem:[#allocation5 + $0xc8] sm:$0xff]
        %v449 = vld [vmem:[#allocation5 + $0xd0] sm:$0xff]
        %v450 = vld [vmem:[#allocation5 + $0xd8] sm:$0xff]
        %v451 = vld [vmem:[#allocation5 + $0xe0] sm:$0xff]
        %v452 = vld [vmem:[#allocation5 + $0xe8] sm:$0xff]
        %v453 = vld [vmem:[#allocation5 + $0xf0] sm:$0xff]
        %v454 = vld [vmem:[#allocation5 + $0xf8] sm:$0xff]
        %v455 = vld [vmem:[#allocation7] sm:$0x1]
        %v457 = vperm.slane %v455, 0
        %459 = vmatpush.msra.mxu0 %v438
        %460 = vmatpush.msra.mxu0 %v437
        %461 = vmatpush.msra.mxu0 %v436
        %462 = vmatpush.msra.mxu0 %v435
        %463 = vmatpush.msra.mxu0 %v434
        %464 = vmatpush.msra.mxu0 %v433
        %465 = vmatpush.msra.mxu0 %v432
        %466 = vmatpush.msra.mxu0 %v431
        %467 = vmatpush.msra.mxu0 %v430
        %468 = vmatpush.msra.mxu0 %v429
        %469 = vmatpush.msra.mxu0 %v428
        %470 = vmatpush.msra.mxu0 %v427
        %471 = vmatpush.msra.mxu0 %v426
        %472 = vmatpush.msra.mxu0 %v425
        %473 = vmatpush.msra.mxu0 %v424
        %474 = vmatpush.msra.mxu0 %v423
        %475 = vmatmul.f32.gmra.mxu0 %v295
        %v476 = vpop.f32.mrf.mxu0
        %v477 = vadd.f32 %v457, %v476
        %478 = vmatmul.f32.gmra.mxu0 %v297
        %v479 = vpop.f32.mrf.mxu0
        %v480 = vadd.f32 %v457, %v479
        %481 = vmatmul.f32.gmra.mxu0 %v299
        %v482 = vpop.f32.mrf.mxu0
        %v483 = vadd.f32 %v457, %v482
        %484 = vmatmul.f32.gmra.mxu0 %v301
        %v485 = vpop.f32.mrf.mxu0
        %v486 = vadd.f32 %v457, %v485
        %487 = vmatmul.f32.gmra.mxu0 %v303
        %v488 = vpop.f32.mrf.mxu0
        %v489 = vadd.f32 %v457, %v488
        %490 = vmatmul.f32.gmra.mxu0 %v305
        %v491 = vpop.f32.mrf.mxu0
        %v492 = vadd.f32 %v457, %v491
        %493 = vmatmul.f32.gmra.mxu0 %v307
        %v494 = vpop.f32.mrf.mxu0
        %v495 = vadd.f32 %v457, %v494
        %496 = vmatmul.f32.gmra.mxu0 %v309
        %v497 = vpop.f32.mrf.mxu0
        %v498 = vadd.f32 %v457, %v497
        %499 = vmatmul.f32.gmra.mxu0 %v311
        %v500 = vpop.f32.mrf.mxu0
        %v501 = vadd.f32 %v457, %v500
        %502 = vmatmul.f32.gmra.mxu0 %v313
        %v503 = vpop.f32.mrf.mxu0
        %v504 = vadd.f32 %v457, %v503
        %505 = vmatmul.f32.gmra.mxu0 %v315
        %v506 = vpop.f32.mrf.mxu0
        %v507 = vadd.f32 %v457, %v506
        %508 = vmatmul.f32.gmra.mxu0 %v317
        %v509 = vpop.f32.mrf.mxu0
        %v510 = vadd.f32 %v457, %v509
        %511 = vmatmul.f32.gmra.mxu0 %v319
        %v512 = vpop.f32.mrf.mxu0
        %v513 = vadd.f32 %v457, %v512
        %514 = vmatmul.f32.gmra.mxu0 %v321
        %v515 = vpop.f32.mrf.mxu0
        %v516 = vadd.f32 %v457, %v515
        %517 = vmatmul.f32.gmra.mxu0 %v323
        %v518 = vpop.f32.mrf.mxu0
        %v519 = vadd.f32 %v457, %v518
        %520 = vmatmul.f32.gmra.mxu0 %v325
        %v521 = vpop.f32.mrf.mxu0
        %v522 = vadd.f32 %v457, %v521
        %523 = vmatmul.f32.gmra.mxu0 %v327
        %v524 = vpop.f32.mrf.mxu0
        %v525 = vadd.f32 %v457, %v524
        %526 = vmatmul.f32.gmra.mxu0 %v329
        %v527 = vpop.f32.mrf.mxu0
        %v528 = vadd.f32 %v457, %v527
        %529 = vmatmul.f32.gmra.mxu0 %v331
        %v530 = vpop.f32.mrf.mxu0
        %v531 = vadd.f32 %v457, %v530
        %532 = vmatmul.f32.gmra.mxu0 %v333
        %v533 = vpop.f32.mrf.mxu0
        %v534 = vadd.f32 %v457, %v533
        %535 = vmatmul.f32.gmra.mxu0 %v335
        %v536 = vpop.f32.mrf.mxu0
        %v537 = vadd.f32 %v457, %v536
        %538 = vmatmul.f32.gmra.mxu0 %v337
        %v539 = vpop.f32.mrf.mxu0
        %v540 = vadd.f32 %v457, %v539
        %541 = vmatmul.f32.gmra.mxu0 %v339
        %v542 = vpop.f32.mrf.mxu0
        %v543 = vadd.f32 %v457, %v542
        %544 = vmatmul.f32.gmra.mxu0 %v341
        %v545 = vpop.f32.mrf.mxu0
        %v546 = vadd.f32 %v457, %v545
        %547 = vmatmul.f32.gmra.mxu0 %v343
        %v548 = vpop.f32.mrf.mxu0
        %v549 = vadd.f32 %v457, %v548
        %550 = vmatmul.f32.gmra.mxu0 %v345
        %v551 = vpop.f32.mrf.mxu0
        %v552 = vadd.f32 %v457, %v551
        %553 = vmatmul.f32.gmra.mxu0 %v347
        %v554 = vpop.f32.mrf.mxu0
        %v555 = vadd.f32 %v457, %v554
        %556 = vmatmul.f32.gmra.mxu0 %v349
        %v557 = vpop.f32.mrf.mxu0
        %v558 = vadd.f32 %v457, %v557
        %559 = vmatmul.f32.gmra.mxu0 %v351
        %v560 = vpop.f32.mrf.mxu0
        %v561 = vadd.f32 %v457, %v560
        %562 = vmatmul.f32.gmra.mxu0 %v353
        %v563 = vpop.f32.mrf.mxu0
        %v564 = vadd.f32 %v457, %v563
        %565 = vmatmul.f32.gmra.mxu0 %v355
        %v566 = vpop.f32.mrf.mxu0
        %v567 = vadd.f32 %v457, %v566
        %568 = vmatmul.f32.gmra.mxu0 %v357
        %v569 = vpop.f32.mrf.mxu0
        %v570 = vadd.f32 %v457, %v569
        %571 = vmatmul.f32.gmra.mxu0 %v359
        %v572 = vpop.f32.mrf.mxu0
        %v573 = vadd.f32 %v457, %v572
        %574 = vmatmul.f32.gmra.mxu0 %v361
        %v575 = vpop.f32.mrf.mxu0
        %v576 = vadd.f32 %v457, %v575
        %577 = vmatmul.f32.gmra.mxu0 %v363
        %v578 = vpop.f32.mrf.mxu0
        %v579 = vadd.f32 %v457, %v578
        %580 = vmatmul.f32.gmra.mxu0 %v365
        %v581 = vpop.f32.mrf.mxu0
        %v582 = vadd.f32 %v457, %v581
        %583 = vmatmul.f32.gmra.mxu0 %v367
        %v584 = vpop.f32.mrf.mxu0
        %v585 = vadd.f32 %v457, %v584
        %586 = vmatmul.f32.gmra.mxu0 %v369
        %v587 = vpop.f32.mrf.mxu0
        %v588 = vadd.f32 %v457, %v587
        %589 = vmatmul.f32.gmra.mxu0 %v371
        %v590 = vpop.f32.mrf.mxu0
        %v591 = vadd.f32 %v457, %v590
        %592 = vmatmul.f32.gmra.mxu0 %v373
        %v593 = vpop.f32.mrf.mxu0
        %v594 = vadd.f32 %v457, %v593
        %595 = vmatmul.f32.gmra.mxu0 %v375
        %v596 = vpop.f32.mrf.mxu0
        %v597 = vadd.f32 %v457, %v596
        %598 = vmatmul.f32.gmra.mxu0 %v377
        %v599 = vpop.f32.mrf.mxu0
        %v600 = vadd.f32 %v457, %v599
        %601 = vmatmul.f32.gmra.mxu0 %v379
        %v602 = vpop.f32.mrf.mxu0
        %v603 = vadd.f32 %v457, %v602
        %604 = vmatmul.f32.gmra.mxu0 %v381
        %v605 = vpop.f32.mrf.mxu0
        %v606 = vadd.f32 %v457, %v605
        %607 = vmatmul.f32.gmra.mxu0 %v383
        %v608 = vpop.f32.mrf.mxu0
        %v609 = vadd.f32 %v457, %v608
        %610 = vmatmul.f32.gmra.mxu0 %v385
        %v611 = vpop.f32.mrf.mxu0
        %v612 = vadd.f32 %v457, %v611
        %613 = vmatmul.f32.gmra.mxu0 %v387
        %v614 = vpop.f32.mrf.mxu0
        %v615 = vadd.f32 %v457, %v614
        %616 = vmatmul.f32.gmra.mxu0 %v389
        %v617 = vpop.f32.mrf.mxu0
        %v618 = vadd.f32 %v457, %v617
        %619 = vmatmul.f32.gmra.mxu0 %v391
        %v620 = vpop.f32.mrf.mxu0
        %v621 = vadd.f32 %v457, %v620
        %622 = vmatmul.f32.gmra.mxu0 %v393
        %v623 = vpop.f32.mrf.mxu0
        %v624 = vadd.f32 %v457, %v623
        %625 = vmatmul.f32.gmra.mxu0 %v395
        %v626 = vpop.f32.mrf.mxu0
        %v627 = vadd.f32 %v457, %v626
        %628 = vmatmul.f32.gmra.mxu0 %v397
        %v629 = vpop.f32.mrf.mxu0
        %v630 = vadd.f32 %v457, %v629
        %631 = vmatmul.f32.gmra.mxu0 %v399
        %v632 = vpop.f32.mrf.mxu0
        %v633 = vadd.f32 %v457, %v632
        %634 = vmatmul.f32.gmra.mxu0 %v401
        %v635 = vpop.f32.mrf.mxu0
        %v636 = vadd.f32 %v457, %v635
        %637 = vmatmul.f32.gmra.mxu0 %v403
        %v638 = vpop.f32.mrf.mxu0
        %v639 = vadd.f32 %v457, %v638
        %640 = vmatmul.f32.gmra.mxu0 %v405
        %v641 = vpop.f32.mrf.mxu0
        %v642 = vadd.f32 %v457, %v641
        %643 = vmatmul.f32.gmra.mxu0 %v407
        %v644 = vpop.f32.mrf.mxu0
        %v645 = vadd.f32 %v457, %v644
        %646 = vmatmul.f32.gmra.mxu0 %v409
        %v647 = vpop.f32.mrf.mxu0
        %v648 = vadd.f32 %v457, %v647
        %649 = vmatmul.f32.gmra.mxu0 %v411
        %v650 = vpop.f32.mrf.mxu0
        %v651 = vadd.f32 %v457, %v650
        %652 = vmatmul.f32.gmra.mxu0 %v413
        %v653 = vpop.f32.mrf.mxu0
        %v654 = vadd.f32 %v457, %v653
        %655 = vmatmul.f32.gmra.mxu0 %v415
        %v656 = vpop.f32.mrf.mxu0
        %v657 = vadd.f32 %v457, %v656
        %658 = vmatmul.f32.gmra.mxu0 %v417
        %v659 = vpop.f32.mrf.mxu0
        %v660 = vadd.f32 %v457, %v659
        %661 = vmatmul.f32.gmra.mxu0 %v419
        %v662 = vpop.f32.mrf.mxu0
        %v663 = vadd.f32 %v457, %v662
        %664 = vmatmul.f32.gmra.mxu0 %v421
        %v665 = vpop.f32.mrf.mxu0
        %v666 = vadd.f32 %v457, %v665
        %667 = vdwg.mxu0
        %668 = vmatpush.msra.mxu0 %v454
        %669 = vmatpush.msra.mxu0 %v453
        %670 = vmatpush.msra.mxu0 %v452
        %671 = vmatpush.msra.mxu0 %v451
        %672 = vmatpush.msra.mxu0 %v450
        %673 = vmatpush.msra.mxu0 %v449
        %674 = vmatpush.msra.mxu0 %v448
        %675 = vmatpush.msra.mxu0 %v447
        %676 = vmatpush.msra.mxu0 %v446
        %677 = vmatpush.msra.mxu0 %v445
        %678 = vmatpush.msra.mxu0 %v444
        %679 = vmatpush.msra.mxu0 %v443
        %680 = vmatpush.msra.mxu0 %v442
        %681 = vmatpush.msra.mxu0 %v441
        %682 = vmatpush.msra.mxu0 %v440
        %683 = vmatpush.msra.mxu0 %v439
        %684 = vmatmul.f32.gmra.mxu0 %v296
        %v685 = vpop.f32.mrf.mxu0
        %v686 = vadd.f32 %v477, %v685
        %687 = vmatmul.f32.gmra.mxu0 %v298
        %v688 = vpop.f32.mrf.mxu0
        %v689 = vadd.f32 %v480, %v688
        %690 = vmatmul.f32.gmra.mxu0 %v300
        %v691 = vpop.f32.mrf.mxu0
        %v692 = vadd.f32 %v483, %v691
        %693 = vmatmul.f32.gmra.mxu0 %v302
        %v694 = vpop.f32.mrf.mxu0
        %v695 = vadd.f32 %v486, %v694
        %696 = vmatmul.f32.gmra.mxu0 %v304
        %v697 = vpop.f32.mrf.mxu0
        %v698 = vadd.f32 %v489, %v697
        %699 = vmatmul.f32.gmra.mxu0 %v306
        %v700 = vpop.f32.mrf.mxu0
        %v701 = vadd.f32 %v492, %v700
        %702 = vmatmul.f32.gmra.mxu0 %v308
        %v703 = vpop.f32.mrf.mxu0
        %v704 = vadd.f32 %v495, %v703
        %705 = vmatmul.f32.gmra.mxu0 %v310
        %v706 = vpop.f32.mrf.mxu0
        %v707 = vadd.f32 %v498, %v706
        %708 = vmatmul.f32.gmra.mxu0 %v312
        %v709 = vpop.f32.mrf.mxu0
        %v710 = vadd.f32 %v501, %v709
        %711 = vmatmul.f32.gmra.mxu0 %v314
        %v712 = vpop.f32.mrf.mxu0
        %v713 = vadd.f32 %v504, %v712
        %714 = vmatmul.f32.gmra.mxu0 %v316
        %v715 = vpop.f32.mrf.mxu0
        %v716 = vadd.f32 %v507, %v715
        %717 = vmatmul.f32.gmra.mxu0 %v318
        %v718 = vpop.f32.mrf.mxu0
        %v719 = vadd.f32 %v510, %v718
        %720 = vmatmul.f32.gmra.mxu0 %v320
        %v721 = vpop.f32.mrf.mxu0
        %v722 = vadd.f32 %v513, %v721
        %723 = vmatmul.f32.gmra.mxu0 %v322
        %v724 = vpop.f32.mrf.mxu0
        %v725 = vadd.f32 %v516, %v724
        %726 = vmatmul.f32.gmra.mxu0 %v324
        %v727 = vpop.f32.mrf.mxu0
        %v728 = vadd.f32 %v519, %v727
        %729 = vmatmul.f32.gmra.mxu0 %v326
        %v730 = vpop.f32.mrf.mxu0
        %v731 = vadd.f32 %v522, %v730
        %732 = vmatmul.f32.gmra.mxu0 %v328
        %v733 = vpop.f32.mrf.mxu0
        %v734 = vadd.f32 %v525, %v733
        %735 = vmatmul.f32.gmra.mxu0 %v330
        %v736 = vpop.f32.mrf.mxu0
        %v737 = vadd.f32 %v528, %v736
        %738 = vmatmul.f32.gmra.mxu0 %v332
        %v739 = vpop.f32.mrf.mxu0
        %v740 = vadd.f32 %v531, %v739
        %741 = vmatmul.f32.gmra.mxu0 %v334
        %v742 = vpop.f32.mrf.mxu0
        %v743 = vadd.f32 %v534, %v742
        %744 = vmatmul.f32.gmra.mxu0 %v336
        %v745 = vpop.f32.mrf.mxu0
        %v746 = vadd.f32 %v537, %v745
        %747 = vmatmul.f32.gmra.mxu0 %v338
        %v748 = vpop.f32.mrf.mxu0
        %v749 = vadd.f32 %v540, %v748
        %750 = vmatmul.f32.gmra.mxu0 %v340
        %v751 = vpop.f32.mrf.mxu0
        %v752 = vadd.f32 %v543, %v751
        %753 = vmatmul.f32.gmra.mxu0 %v342
        %v754 = vpop.f32.mrf.mxu0
        %v755 = vadd.f32 %v546, %v754
        %756 = vmatmul.f32.gmra.mxu0 %v344
        %v757 = vpop.f32.mrf.mxu0
        %v758 = vadd.f32 %v549, %v757
        %759 = vmatmul.f32.gmra.mxu0 %v346
        %v760 = vpop.f32.mrf.mxu0
        %v761 = vadd.f32 %v552, %v760
        %762 = vmatmul.f32.gmra.mxu0 %v348
        %v763 = vpop.f32.mrf.mxu0
        %v764 = vadd.f32 %v555, %v763
        %765 = vmatmul.f32.gmra.mxu0 %v350
        %v766 = vpop.f32.mrf.mxu0
        %v767 = vadd.f32 %v558, %v766
        %768 = vmatmul.f32.gmra.mxu0 %v352
        %v769 = vpop.f32.mrf.mxu0
        %v770 = vadd.f32 %v561, %v769
        %771 = vmatmul.f32.gmra.mxu0 %v354
        %v772 = vpop.f32.mrf.mxu0
        %v773 = vadd.f32 %v564, %v772
        %774 = vmatmul.f32.gmra.mxu0 %v356
        %v775 = vpop.f32.mrf.mxu0
        %v776 = vadd.f32 %v567, %v775
        %777 = vmatmul.f32.gmra.mxu0 %v358
        %v778 = vpop.f32.mrf.mxu0
        %v779 = vadd.f32 %v570, %v778
        %780 = vmatmul.f32.gmra.mxu0 %v360
        %v781 = vpop.f32.mrf.mxu0
        %v782 = vadd.f32 %v573, %v781
        %783 = vmatmul.f32.gmra.mxu0 %v362
        %v784 = vpop.f32.mrf.mxu0
        %v785 = vadd.f32 %v576, %v784
        %786 = vmatmul.f32.gmra.mxu0 %v364
        %v787 = vpop.f32.mrf.mxu0
        %v788 = vadd.f32 %v579, %v787
        %789 = vmatmul.f32.gmra.mxu0 %v366
        %v790 = vpop.f32.mrf.mxu0
        %v791 = vadd.f32 %v582, %v790
        %792 = vmatmul.f32.gmra.mxu0 %v368
        %v793 = vpop.f32.mrf.mxu0
        %v794 = vadd.f32 %v585, %v793
        %795 = vmatmul.f32.gmra.mxu0 %v370
        %v796 = vpop.f32.mrf.mxu0
        %v797 = vadd.f32 %v588, %v796
        %798 = vmatmul.f32.gmra.mxu0 %v372
        %v799 = vpop.f32.mrf.mxu0
        %v800 = vadd.f32 %v591, %v799
        %801 = vmatmul.f32.gmra.mxu0 %v374
        %v802 = vpop.f32.mrf.mxu0
        %v803 = vadd.f32 %v594, %v802
        %804 = vmatmul.f32.gmra.mxu0 %v376
        %v805 = vpop.f32.mrf.mxu0
        %v806 = vadd.f32 %v597, %v805
        %807 = vmatmul.f32.gmra.mxu0 %v378
        %v808 = vpop.f32.mrf.mxu0
        %v809 = vadd.f32 %v600, %v808
        %810 = vmatmul.f32.gmra.mxu0 %v380
        %v811 = vpop.f32.mrf.mxu0
        %v812 = vadd.f32 %v603, %v811
        %813 = vmatmul.f32.gmra.mxu0 %v382
        %v814 = vpop.f32.mrf.mxu0
        %v815 = vadd.f32 %v606, %v814
        %816 = vmatmul.f32.gmra.mxu0 %v384
        %v817 = vpop.f32.mrf.mxu0
        %v818 = vadd.f32 %v609, %v817
        %819 = vmatmul.f32.gmra.mxu0 %v386
        %v820 = vpop.f32.mrf.mxu0
        %v821 = vadd.f32 %v612, %v820
        %822 = vmatmul.f32.gmra.mxu0 %v388
        %v823 = vpop.f32.mrf.mxu0
        %v824 = vadd.f32 %v615, %v823
        %825 = vmatmul.f32.gmra.mxu0 %v390
        %v826 = vpop.f32.mrf.mxu0
        %v827 = vadd.f32 %v618, %v826
        %828 = vmatmul.f32.gmra.mxu0 %v392
        %v829 = vpop.f32.mrf.mxu0
        %v830 = vadd.f32 %v621, %v829
        %831 = vmatmul.f32.gmra.mxu0 %v394
        %v832 = vpop.f32.mrf.mxu0
        %v833 = vadd.f32 %v624, %v832
        %834 = vmatmul.f32.gmra.mxu0 %v396
        %v835 = vpop.f32.mrf.mxu0
        %v836 = vadd.f32 %v627, %v835
        %837 = vmatmul.f32.gmra.mxu0 %v398
        %v838 = vpop.f32.mrf.mxu0
        %v839 = vadd.f32 %v630, %v838
        %840 = vmatmul.f32.gmra.mxu0 %v400
        %v841 = vpop.f32.mrf.mxu0
        %v842 = vadd.f32 %v633, %v841
        %843 = vmatmul.f32.gmra.mxu0 %v402
        %v844 = vpop.f32.mrf.mxu0
        %v845 = vadd.f32 %v636, %v844
        %846 = vmatmul.f32.gmra.mxu0 %v404
        %v847 = vpop.f32.mrf.mxu0
        %v848 = vadd.f32 %v639, %v847
        %849 = vmatmul.f32.gmra.mxu0 %v406
        %v850 = vpop.f32.mrf.mxu0
        %v851 = vadd.f32 %v642, %v850
        %852 = vmatmul.f32.gmra.mxu0 %v408
        %v853 = vpop.f32.mrf.mxu0
        %v854 = vadd.f32 %v645, %v853
        %855 = vmatmul.f32.gmra.mxu0 %v410
        %v856 = vpop.f32.mrf.mxu0
        %v857 = vadd.f32 %v648, %v856
        %858 = vmatmul.f32.gmra.mxu0 %v412
        %v859 = vpop.f32.mrf.mxu0
        %v860 = vadd.f32 %v651, %v859
        %861 = vmatmul.f32.gmra.mxu0 %v414
        %v862 = vpop.f32.mrf.mxu0
        %v863 = vadd.f32 %v654, %v862
        %864 = vmatmul.f32.gmra.mxu0 %v416
        %v865 = vpop.f32.mrf.mxu0
        %v866 = vadd.f32 %v657, %v865
        %867 = vmatmul.f32.gmra.mxu0 %v418
        %v868 = vpop.f32.mrf.mxu0
        %v869 = vadd.f32 %v660, %v868
        %870 = vmatmul.f32.gmra.mxu0 %v420
        %v871 = vpop.f32.mrf.mxu0
        %v872 = vadd.f32 %v663, %v871
        %873 = vmatmul.f32.gmra.mxu0 %v422
        %v874 = vpop.f32.mrf.mxu0
        %v875 = vadd.f32 %v666, %v874
        %876 = vdwg.mxu0
        %vm877 = vcmp.gt.f32.partialorder %v686, 0.0
        %vm878 = vcmp.gt.f32.partialorder %v689, 0.0
        %vm879 = vcmp.gt.f32.partialorder %v692, 0.0
        %vm880 = vcmp.gt.f32.partialorder %v695, 0.0
        %vm881 = vcmp.gt.f32.partialorder %v698, 0.0
        %vm882 = vcmp.gt.f32.partialorder %v701, 0.0
        %vm883 = vcmp.gt.f32.partialorder %v704, 0.0
        %vm884 = vcmp.gt.f32.partialorder %v707, 0.0
        %vm885 = vcmp.gt.f32.partialorder %v710, 0.0
        %vm886 = vcmp.gt.f32.partialorder %v713, 0.0
        %vm887 = vcmp.gt.f32.partialorder %v716, 0.0
        %vm888 = vcmp.gt.f32.partialorder %v719, 0.0
        %vm889 = vcmp.gt.f32.partialorder %v722, 0.0
        %vm890 = vcmp.gt.f32.partialorder %v725, 0.0
        %vm891 = vcmp.gt.f32.partialorder %v728, 0.0
        %vm892 = vcmp.gt.f32.partialorder %v731, 0.0
        %vm893 = vcmp.gt.f32.partialorder %v734, 0.0
        %vm894 = vcmp.gt.f32.partialorder %v737, 0.0
        %vm895 = vcmp.gt.f32.partialorder %v740, 0.0
        %vm896 = vcmp.gt.f32.partialorder %v743, 0.0
        %vm897 = vcmp.gt.f32.partialorder %v746, 0.0
        %vm898 = vcmp.gt.f32.partialorder %v749, 0.0
        %vm899 = vcmp.gt.f32.partialorder %v752, 0.0
        %vm900 = vcmp.gt.f32.partialorder %v755, 0.0
        %vm901 = vcmp.gt.f32.partialorder %v758, 0.0
        %vm902 = vcmp.gt.f32.partialorder %v761, 0.0
        %vm903 = vcmp.gt.f32.partialorder %v764, 0.0
        %vm904 = vcmp.gt.f32.partialorder %v767, 0.0
        %vm905 = vcmp.gt.f32.partialorder %v770, 0.0
        %vm906 = vcmp.gt.f32.partialorder %v773, 0.0
        %vm907 = vcmp.gt.f32.partialorder %v776, 0.0
        %vm908 = vcmp.gt.f32.partialorder %v779, 0.0
        %vm909 = vcmp.gt.f32.partialorder %v782, 0.0
        %vm910 = vcmp.gt.f32.partialorder %v785, 0.0
        %vm911 = vcmp.gt.f32.partialorder %v788, 0.0
        %vm912 = vcmp.gt.f32.partialorder %v791, 0.0
        %vm913 = vcmp.gt.f32.partialorder %v794, 0.0
        %vm914 = vcmp.gt.f32.partialorder %v797, 0.0
        %vm915 = vcmp.gt.f32.partialorder %v800, 0.0
        %vm916 = vcmp.gt.f32.partialorder %v803, 0.0
        %vm917 = vcmp.gt.f32.partialorder %v806, 0.0
        %vm918 = vcmp.gt.f32.partialorder %v809, 0.0
        %vm919 = vcmp.gt.f32.partialorder %v812, 0.0
        %vm920 = vcmp.gt.f32.partialorder %v815, 0.0
        %vm921 = vcmp.gt.f32.partialorder %v818, 0.0
        %vm922 = vcmp.gt.f32.partialorder %v821, 0.0
        %vm923 = vcmp.gt.f32.partialorder %v824, 0.0
        %vm924 = vcmp.gt.f32.partialorder %v827, 0.0
        %vm925 = vcmp.gt.f32.partialorder %v830, 0.0
        %vm926 = vcmp.gt.f32.partialorder %v833, 0.0
        %vm927 = vcmp.gt.f32.partialorder %v836, 0.0
        %vm928 = vcmp.gt.f32.partialorder %v839, 0.0
        %vm929 = vcmp.gt.f32.partialorder %v842, 0.0
        %vm930 = vcmp.gt.f32.partialorder %v845, 0.0
        %vm931 = vcmp.gt.f32.partialorder %v848, 0.0
        %vm932 = vcmp.gt.f32.partialorder %v851, 0.0
        %vm933 = vcmp.gt.f32.partialorder %v854, 0.0
        %vm934 = vcmp.gt.f32.partialorder %v857, 0.0
        %vm935 = vcmp.gt.f32.partialorder %v860, 0.0
        %vm936 = vcmp.gt.f32.partialorder %v863, 0.0
        %vm937 = vcmp.gt.f32.partialorder %v866, 0.0
        %vm938 = vcmp.gt.f32.partialorder %v869, 0.0
        %vm939 = vcmp.gt.f32.partialorder %v872, 0.0
        %vm940 = vcmp.gt.f32.partialorder %v875, 0.0
        %v941 = vmul.f32 %v686, 0.01
        %v942 = vmul.f32 %v689, 0.01
        %v943 = vmul.f32 %v692, 0.01
        %v944 = vmul.f32 %v695, 0.01
        %v945 = vmul.f32 %v698, 0.01
        %v946 = vmul.f32 %v701, 0.01
        %v947 = vmul.f32 %v704, 0.01
        %v948 = vmul.f32 %v707, 0.01
        %v949 = vmul.f32 %v710, 0.01
        %v950 = vmul.f32 %v713, 0.01
        %v951 = vmul.f32 %v716, 0.01
        %v952 = vmul.f32 %v719, 0.01
        %v953 = vmul.f32 %v722, 0.01
        %v954 = vmul.f32 %v725, 0.01
        %v955 = vmul.f32 %v728, 0.01
        %v956 = vmul.f32 %v731, 0.01
        %v957 = vmul.f32 %v734, 0.01
        %v958 = vmul.f32 %v737, 0.01
        %v959 = vmul.f32 %v740, 0.01
        %v960 = vmul.f32 %v743, 0.01
        %v961 = vmul.f32 %v746, 0.01
        %v962 = vmul.f32 %v749, 0.01
        %v963 = vmul.f32 %v752, 0.01
        %v964 = vmul.f32 %v755, 0.01
        %v965 = vmul.f32 %v758, 0.01
        %v966 = vmul.f32 %v761, 0.01
        %v967 = vmul.f32 %v764, 0.01
        %v968 = vmul.f32 %v767, 0.01
        %v969 = vmul.f32 %v770, 0.01
        %v970 = vmul.f32 %v773, 0.01
        %v971 = vmul.f32 %v776, 0.01
        %v972 = vmul.f32 %v779, 0.01
        %v973 = vmul.f32 %v782, 0.01
        %v974 = vmul.f32 %v785, 0.01
        %v975 = vmul.f32 %v788, 0.01
        %v976 = vmul.f32 %v791, 0.01
        %v977 = vmul.f32 %v794, 0.01
        %v978 = vmul.f32 %v797, 0.01
        %v979 = vmul.f32 %v800, 0.01
        %v980 = vmul.f32 %v803, 0.01
        %v981 = vmul.f32 %v806, 0.01
        %v982 = vmul.f32 %v809, 0.01
        %v983 = vmul.f32 %v812, 0.01
        %v984 = vmul.f32 %v815, 0.01
        %v985 = vmul.f32 %v818, 0.01
        %v986 = vmul.f32 %v821, 0.01
        %v987 = vmul.f32 %v824, 0.01
        %v988 = vmul.f32 %v827, 0.01
        %v989 = vmul.f32 %v830, 0.01
        %v990 = vmul.f32 %v833, 0.01
        %v991 = vmul.f32 %v836, 0.01
        %v992 = vmul.f32 %v839, 0.01
        %v993 = vmul.f32 %v842, 0.01
        %v994 = vmul.f32 %v845, 0.01
        %v995 = vmul.f32 %v848, 0.01
        %v996 = vmul.f32 %v851, 0.01
        %v997 = vmul.f32 %v854, 0.01
        %v998 = vmul.f32 %v857, 0.01
        %v999 = vmul.f32 %v860, 0.01
        %v1000 = vmul.f32 %v863, 0.01
        %v1001 = vmul.f32 %v866, 0.01
        %v1002 = vmul.f32 %v869, 0.01
        %v1003 = vmul.f32 %v872, 0.01
        %v1004 = vmul.f32 %v875, 0.01
        %v1005 = vsel %vm877, %v686, %v941
        %v1006 = vsel %vm878, %v689, %v942
        %v1007 = vsel %vm879, %v692, %v943
        %v1008 = vsel %vm880, %v695, %v944
        %v1009 = vsel %vm881, %v698, %v945
        %v1010 = vsel %vm882, %v701, %v946
        %v1011 = vsel %vm883, %v704, %v947
        %v1012 = vsel %vm884, %v707, %v948
        %v1013 = vsel %vm885, %v710, %v949
        %v1014 = vsel %vm886, %v713, %v950
        %v1015 = vsel %vm887, %v716, %v951
        %v1016 = vsel %vm888, %v719, %v952
        %v1017 = vsel %vm889, %v722, %v953
        %v1018 = vsel %vm890, %v725, %v954
        %v1019 = vsel %vm891, %v728, %v955
        %v1020 = vsel %vm892, %v731, %v956
        %v1021 = vsel %vm893, %v734, %v957
        %v1022 = vsel %vm894, %v737, %v958
        %v1023 = vsel %vm895, %v740, %v959
        %v1024 = vsel %vm896, %v743, %v960
        %v1025 = vsel %vm897, %v746, %v961
        %v1026 = vsel %vm898, %v749, %v962
        %v1027 = vsel %vm899, %v752, %v963
        %v1028 = vsel %vm900, %v755, %v964
        %v1029 = vsel %vm901, %v758, %v965
        %v1030 = vsel %vm902, %v761, %v966
        %v1031 = vsel %vm903, %v764, %v967
        %v1032 = vsel %vm904, %v767, %v968
        %v1033 = vsel %vm905, %v770, %v969
        %v1034 = vsel %vm906, %v773, %v970
        %v1035 = vsel %vm907, %v776, %v971
        %v1036 = vsel %vm908, %v779, %v972
        %v1037 = vsel %vm909, %v782, %v973
        %v1038 = vsel %vm910, %v785, %v974
        %v1039 = vsel %vm911, %v788, %v975
        %v1040 = vsel %vm912, %v791, %v976
        %v1041 = vsel %vm913, %v794, %v977
        %v1042 = vsel %vm914, %v797, %v978
        %v1043 = vsel %vm915, %v800, %v979
        %v1044 = vsel %vm916, %v803, %v980
        %v1045 = vsel %vm917, %v806, %v981
        %v1046 = vsel %vm918, %v809, %v982
        %v1047 = vsel %vm919, %v812, %v983
        %v1048 = vsel %vm920, %v815, %v984
        %v1049 = vsel %vm921, %v818, %v985
        %v1050 = vsel %vm922, %v821, %v986
        %v1051 = vsel %vm923, %v824, %v987
        %v1052 = vsel %vm924, %v827, %v988
        %v1053 = vsel %vm925, %v830, %v989
        %v1054 = vsel %vm926, %v833, %v990
        %v1055 = vsel %vm927, %v836, %v991
        %v1056 = vsel %vm928, %v839, %v992
        %v1057 = vsel %vm929, %v842, %v993
        %v1058 = vsel %vm930, %v845, %v994
        %v1059 = vsel %vm931, %v848, %v995
        %v1060 = vsel %vm932, %v851, %v996
        %v1061 = vsel %vm933, %v854, %v997
        %v1062 = vsel %vm934, %v857, %v998
        %v1063 = vsel %vm935, %v860, %v999
        %v1064 = vsel %vm936, %v863, %v1000
        %v1065 = vsel %vm937, %v866, %v1001
        %v1066 = vsel %vm938, %v869, %v1002
        %v1067 = vsel %vm939, %v872, %v1003
        %v1068 = vsel %vm940, %v875, %v1004
        %v1069 = vld [vmem:[%s261] sm:$0xff]
        %v1070 = vld [vmem:[%s261 + $0x8] sm:$0xff]
        %v1071 = vld [vmem:[%s261 + $0x10] sm:$0xff]
        %v1072 = vld [vmem:[%s261 + $0x18] sm:$0xff]
        %v1073 = vld [vmem:[%s261 + $0x20] sm:$0xff]
        %v1074 = vld [vmem:[%s261 + $0x28] sm:$0xff]
        %v1075 = vld [vmem:[%s261 + $0x30] sm:$0xff]
        %v1076 = vld [vmem:[%s261 + $0x38] sm:$0xff]
        %v1077 = vld [vmem:[%s261 + $0x40] sm:$0xff]
        %v1078 = vld [vmem:[%s261 + $0x48] sm:$0xff]
        %v1079 = vld [vmem:[%s261 + $0x50] sm:$0xff]
        %v1080 = vld [vmem:[%s261 + $0x58] sm:$0xff]
        %v1081 = vld [vmem:[%s261 + $0x60] sm:$0xff]
        %v1082 = vld [vmem:[%s261 + $0x68] sm:$0xff]
        %v1083 = vld [vmem:[%s261 + $0x70] sm:$0xff]
        %v1084 = vld [vmem:[%s261 + $0x78] sm:$0xff]
        %v1085 = vld [vmem:[%s261 + $0x80] sm:$0xff]
        %v1086 = vld [vmem:[%s261 + $0x88] sm:$0xff]
        %v1087 = vld [vmem:[%s261 + $0x90] sm:$0xff]
        %v1088 = vld [vmem:[%s261 + $0x98] sm:$0xff]
        %v1089 = vld [vmem:[%s261 + $0xa0] sm:$0xff]
        %v1090 = vld [vmem:[%s261 + $0xa8] sm:$0xff]
        %v1091 = vld [vmem:[%s261 + $0xb0] sm:$0xff]
        %v1092 = vld [vmem:[%s261 + $0xb8] sm:$0xff]
        %v1093 = vld [vmem:[%s261 + $0xc0] sm:$0xff]
        %v1094 = vld [vmem:[%s261 + $0xc8] sm:$0xff]
        %v1095 = vld [vmem:[%s261 + $0xd0] sm:$0xff]
        %v1096 = vld [vmem:[%s261 + $0xd8] sm:$0xff]
        %v1097 = vld [vmem:[%s261 + $0xe0] sm:$0xff]
        %v1098 = vld [vmem:[%s261 + $0xe8] sm:$0xff]
        %v1099 = vld [vmem:[%s261 + $0xf0] sm:$0xff]
        %v1100 = vld [vmem:[%s261 + $0xf8] sm:$0xff]
        %v1101 = vld [vmem:[%s261 + $0x100] sm:$0xff]
        %v1102 = vld [vmem:[%s261 + $0x108] sm:$0xff]
        %v1103 = vld [vmem:[%s261 + $0x110] sm:$0xff]
        %v1104 = vld [vmem:[%s261 + $0x118] sm:$0xff]
        %v1105 = vld [vmem:[%s261 + $0x120] sm:$0xff]
        %v1106 = vld [vmem:[%s261 + $0x128] sm:$0xff]
        %v1107 = vld [vmem:[%s261 + $0x130] sm:$0xff]
        %v1108 = vld [vmem:[%s261 + $0x138] sm:$0xff]
        %v1109 = vld [vmem:[%s261 + $0x140] sm:$0xff]
        %v1110 = vld [vmem:[%s261 + $0x148] sm:$0xff]
        %v1111 = vld [vmem:[%s261 + $0x150] sm:$0xff]
        %v1112 = vld [vmem:[%s261 + $0x158] sm:$0xff]
        %v1113 = vld [vmem:[%s261 + $0x160] sm:$0xff]
        %v1114 = vld [vmem:[%s261 + $0x168] sm:$0xff]
        %v1115 = vld [vmem:[%s261 + $0x170] sm:$0xff]
        %v1116 = vld [vmem:[%s261 + $0x178] sm:$0xff]
        %v1117 = vld [vmem:[%s261 + $0x180] sm:$0xff]
        %v1118 = vld [vmem:[%s261 + $0x188] sm:$0xff]
        %v1119 = vld [vmem:[%s261 + $0x190] sm:$0xff]
        %v1120 = vld [vmem:[%s261 + $0x198] sm:$0xff]
        %v1121 = vld [vmem:[%s261 + $0x1a0] sm:$0xff]
        %v1122 = vld [vmem:[%s261 + $0x1a8] sm:$0xff]
        %v1123 = vld [vmem:[%s261 + $0x1b0] sm:$0xff]
        %v1124 = vld [vmem:[%s261 + $0x1b8] sm:$0xff]
        %v1125 = vld [vmem:[%s261 + $0x1c0] sm:$0xff]
        %v1126 = vld [vmem:[%s261 + $0x1c8] sm:$0xff]
        %v1127 = vld [vmem:[%s261 + $0x1d0] sm:$0xff]
        %v1128 = vld [vmem:[%s261 + $0x1d8] sm:$0xff]
        %v1129 = vld [vmem:[%s261 + $0x1e0] sm:$0xff]
        %v1130 = vld [vmem:[%s261 + $0x1e8] sm:$0xff]
        %v1131 = vld [vmem:[%s261 + $0x1f0] sm:$0xff]
        %v1132 = vld [vmem:[%s261 + $0x1f8] sm:$0xff]
        %v1133 = vadd.f32 %v1005, %v1069
        %v1134 = vadd.f32 %v1006, %v1070
        %v1135 = vadd.f32 %v1007, %v1071
        %v1136 = vadd.f32 %v1008, %v1072
        %v1137 = vadd.f32 %v1009, %v1073
        %v1138 = vadd.f32 %v1010, %v1074
        %v1139 = vadd.f32 %v1011, %v1075
        %v1140 = vadd.f32 %v1012, %v1076
        %v1141 = vadd.f32 %v1013, %v1077
        %v1142 = vadd.f32 %v1014, %v1078
        %v1143 = vadd.f32 %v1015, %v1079
        %v1144 = vadd.f32 %v1016, %v1080
        %v1145 = vadd.f32 %v1017, %v1081
        %v1146 = vadd.f32 %v1018, %v1082
        %v1147 = vadd.f32 %v1019, %v1083
        %v1148 = vadd.f32 %v1020, %v1084
        %v1149 = vadd.f32 %v1021, %v1085
        %v1150 = vadd.f32 %v1022, %v1086
        %v1151 = vadd.f32 %v1023, %v1087
        %v1152 = vadd.f32 %v1024, %v1088
        %v1153 = vadd.f32 %v1025, %v1089
        %v1154 = vadd.f32 %v1026, %v1090
        %v1155 = vadd.f32 %v1027, %v1091
        %v1156 = vadd.f32 %v1028, %v1092
        %v1157 = vadd.f32 %v1029, %v1093
        %v1158 = vadd.f32 %v1030, %v1094
        %v1159 = vadd.f32 %v1031, %v1095
        %v1160 = vadd.f32 %v1032, %v1096
        %v1161 = vadd.f32 %v1033, %v1097
        %v1162 = vadd.f32 %v1034, %v1098
        %v1163 = vadd.f32 %v1035, %v1099
        %v1164 = vadd.f32 %v1036, %v1100
        %v1165 = vadd.f32 %v1037, %v1101
        %v1166 = vadd.f32 %v1038, %v1102
        %v1167 = vadd.f32 %v1039, %v1103
        %v1168 = vadd.f32 %v1040, %v1104
        %v1169 = vadd.f32 %v1041, %v1105
        %v1170 = vadd.f32 %v1042, %v1106
        %v1171 = vadd.f32 %v1043, %v1107
        %v1172 = vadd.f32 %v1044, %v1108
        %v1173 = vadd.f32 %v1045, %v1109
        %v1174 = vadd.f32 %v1046, %v1110
        %v1175 = vadd.f32 %v1047, %v1111
        %v1176 = vadd.f32 %v1048, %v1112
        %v1177 = vadd.f32 %v1049, %v1113
        %v1178 = vadd.f32 %v1050, %v1114
        %v1179 = vadd.f32 %v1051, %v1115
        %v1180 = vadd.f32 %v1052, %v1116
        %v1181 = vadd.f32 %v1053, %v1117
        %v1182 = vadd.f32 %v1054, %v1118
        %v1183 = vadd.f32 %v1055, %v1119
        %v1184 = vadd.f32 %v1056, %v1120
        %v1185 = vadd.f32 %v1057, %v1121
        %v1186 = vadd.f32 %v1058, %v1122
        %v1187 = vadd.f32 %v1059, %v1123
        %v1188 = vadd.f32 %v1060, %v1124
        %v1189 = vadd.f32 %v1061, %v1125
        %v1190 = vadd.f32 %v1062, %v1126
        %v1191 = vadd.f32 %v1063, %v1127
        %v1192 = vadd.f32 %v1064, %v1128
        %v1193 = vadd.f32 %v1065, %v1129
        %v1194 = vadd.f32 %v1066, %v1130
        %v1195 = vadd.f32 %v1067, %v1131
        %v1196 = vadd.f32 %v1068, %v1132
        %1197 = vst [vmem:[%s291] sm:$0xff] %v1133
        %1198 = vst [vmem:[%s291 + $0x8] sm:$0xff] %v1134
        %1199 = vst [vmem:[%s291 + $0x10] sm:$0xff] %v1135
        %1200 = vst [vmem:[%s291 + $0x18] sm:$0xff] %v1136
        %1201 = vst [vmem:[%s291 + $0x20] sm:$0xff] %v1137
        %1202 = vst [vmem:[%s291 + $0x28] sm:$0xff] %v1138
        %1203 = vst [vmem:[%s291 + $0x30] sm:$0xff] %v1139
        %1204 = vst [vmem:[%s291 + $0x38] sm:$0xff] %v1140
        %1205 = vst [vmem:[%s291 + $0x40] sm:$0xff] %v1141
        %1206 = vst [vmem:[%s291 + $0x48] sm:$0xff] %v1142
        %1207 = vst [vmem:[%s291 + $0x50] sm:$0xff] %v1143
        %1208 = vst [vmem:[%s291 + $0x58] sm:$0xff] %v1144
        %1209 = vst [vmem:[%s291 + $0x60] sm:$0xff] %v1145
        %1210 = vst [vmem:[%s291 + $0x68] sm:$0xff] %v1146
        %1211 = vst [vmem:[%s291 + $0x70] sm:$0xff] %v1147
        %1212 = vst [vmem:[%s291 + $0x78] sm:$0xff] %v1148
        %1213 = vst [vmem:[%s291 + $0x80] sm:$0xff] %v1149
        %1214 = vst [vmem:[%s291 + $0x88] sm:$0xff] %v1150
        %1215 = vst [vmem:[%s291 + $0x90] sm:$0xff] %v1151
        %1216 = vst [vmem:[%s291 + $0x98] sm:$0xff] %v1152
        %1217 = vst [vmem:[%s291 + $0xa0] sm:$0xff] %v1153
        %1218 = vst [vmem:[%s291 + $0xa8] sm:$0xff] %v1154
        %1219 = vst [vmem:[%s291 + $0xb0] sm:$0xff] %v1155
        %1220 = vst [vmem:[%s291 + $0xb8] sm:$0xff] %v1156
        %1221 = vst [vmem:[%s291 + $0xc0] sm:$0xff] %v1157
        %1222 = vst [vmem:[%s291 + $0xc8] sm:$0xff] %v1158
        %1223 = vst [vmem:[%s291 + $0xd0] sm:$0xff] %v1159
        %1224 = vst [vmem:[%s291 + $0xd8] sm:$0xff] %v1160
        %1225 = vst [vmem:[%s291 + $0xe0] sm:$0xff] %v1161
        %1226 = vst [vmem:[%s291 + $0xe8] sm:$0xff] %v1162
        %1227 = vst [vmem:[%s291 + $0xf0] sm:$0xff] %v1163
        %1228 = vst [vmem:[%s291 + $0xf8] sm:$0xff] %v1164
        %1229 = vst [vmem:[%s291 + $0x100] sm:$0xff] %v1165
        %1230 = vst [vmem:[%s291 + $0x108] sm:$0xff] %v1166
        %1231 = vst [vmem:[%s291 + $0x110] sm:$0xff] %v1167
        %1232 = vst [vmem:[%s291 + $0x118] sm:$0xff] %v1168
        %1233 = vst [vmem:[%s291 + $0x120] sm:$0xff] %v1169
        %1234 = vst [vmem:[%s291 + $0x128] sm:$0xff] %v1170
        %1235 = vst [vmem:[%s291 + $0x130] sm:$0xff] %v1171
        %1236 = vst [vmem:[%s291 + $0x138] sm:$0xff] %v1172
        %1237 = vst [vmem:[%s291 + $0x140] sm:$0xff] %v1173
        %1238 = vst [vmem:[%s291 + $0x148] sm:$0xff] %v1174
        %1239 = vst [vmem:[%s291 + $0x150] sm:$0xff] %v1175
        %1240 = vst [vmem:[%s291 + $0x158] sm:$0xff] %v1176
        %1241 = vst [vmem:[%s291 + $0x160] sm:$0xff] %v1177
        %1242 = vst [vmem:[%s291 + $0x168] sm:$0xff] %v1178
        %1243 = vst [vmem:[%s291 + $0x170] sm:$0xff] %v1179
        %1244 = vst [vmem:[%s291 + $0x178] sm:$0xff] %v1180
        %1245 = vst [vmem:[%s291 + $0x180] sm:$0xff] %v1181
        %1246 = vst [vmem:[%s291 + $0x188] sm:$0xff] %v1182
        %1247 = vst [vmem:[%s291 + $0x190] sm:$0xff] %v1183
        %1248 = vst [vmem:[%s291 + $0x198] sm:$0xff] %v1184
        %1249 = vst [vmem:[%s291 + $0x1a0] sm:$0xff] %v1185
        %1250 = vst [vmem:[%s291 + $0x1a8] sm:$0xff] %v1186
        %1251 = vst [vmem:[%s291 + $0x1b0] sm:$0xff] %v1187
        %1252 = vst [vmem:[%s291 + $0x1b8] sm:$0xff] %v1188
        %1253 = vst [vmem:[%s291 + $0x1c0] sm:$0xff] %v1189
        %1254 = vst [vmem:[%s291 + $0x1c8] sm:$0xff] %v1190
        %1255 = vst [vmem:[%s291 + $0x1d0] sm:$0xff] %v1191
        %1256 = vst [vmem:[%s291 + $0x1d8] sm:$0xff] %v1192
        %1257 = vst [vmem:[%s291 + $0x1e0] sm:$0xff] %v1193
        %1258 = vst [vmem:[%s291 + $0x1e8] sm:$0xff] %v1194
        %1259 = vst [vmem:[%s291 + $0x1f0] sm:$0xff] %v1195
        %1260 = vst [vmem:[%s291 + $0x1f8] sm:$0xff] %v1196
        %s1261 = sand.u32 %s127, 1
        %s1262 = scalar_lea.sflag [#allocation4], %s1261
        %s1263 = sand.u32 %s127, 1
        %s1264 = smul.addr %s1263, 512
        %s1265 = scalar_lea.vmem [#allocation10], %s1264
        // Predicated region
        $region53: #{tpu_custom_call.1} parent=35 // pred_check
          %p1266 = pneg %p137
        $region54: #{tpu_custom_call.1} parent=35 // pred_check_branch
          %1268 = sbr.rel (%p1266) target = $region56
        $region55: #{tpu_custom_call.1} parent=35 // pred_region
          %s1269 = smul.u32 64, %s25
          %1271 = vsyncadd %s1262, 0
          %s1272 = smul.addr %s1269, 8
          %s1273 = scalar_lea.hbm %s4, %s1272
          %s1274 = sshll.u32 %s1265, 4
          %s1275 = int_to_ptr.vmem [resolvable:$true] %s1274
          %s1276 = sshll.u32 %s1273, 4
          %s1277 = int_to_ptr.hbm [resolvable:$true] %s1276
          %1282 = dma.vmem_to_hbm [thread:$0]  %s1275, 8192, %s1277, %s1262, 128, 128, 8
        $region56: #{tpu_custom_call.1} parent=35 // pred_fallthru
          _
      $region36: #{tpu_custom_call.1} parent=5 // pred_fallthru
        _
      %p1283 = scmp.le.s32.totalorder 2, %s20
      // Predicated region
      $region57: #{tpu_custom_call.1} parent=5 // pred_check
        %p1284 = pneg %p1283
      $region58: #{tpu_custom_call.1} parent=5 // pred_check_branch
        %1286 = sbr.rel (%p1284) target = $region60
      $region59: #{tpu_custom_call.1} parent=5 // pred_region
        %s1287 = ssub.s32 %s20, 2
        // Predicated region
        $region61: #{tpu_custom_call.1} parent=59 // pred_check
          %p1288 = pneg %p143
        $region62: #{tpu_custom_call.1} parent=59 // pred_check_branch
          %1290 = sbr.rel (%p1288) target = $region64
        $region63: #{tpu_custom_call.1} parent=59 // pred_region
          %s1291 = sand.u32 %s128, 1
          %s1292 = scalar_lea.sflag [#allocation4], %s1291
          %s1293 = sand.u32 %s128, 1
          %s1294 = smul.addr %s1293, 512
          %s1295 = scalar_lea.vmem [#allocation10], %s1294
          %1297 = dma.done %s1292, 8192
        $region64: #{tpu_custom_call.1} parent=59 // pred_fallthru
          _
      $region60: #{tpu_custom_call.1} parent=5 // pred_fallthru
        _
    $region6: #{tpu_custom_call.1} parent=1 // loop_footer
      %s24 = sadd.s32 1, %s20
    $region7: #{tpu_custom_call.1} parent=1 // loop_footer_branch
      %19 = sbr.rel target = $region3
    $region8: #{tpu_custom_call.1} parent=1 // loop_exit
      _
    %1298 = vsyncpa [#allocation3], 1
    %s1299 = scalar_lea.sflag [#allocation3], 1
    %1300 = vsyncpa %s1299, 1
    %1301 = vsyncpa [#allocation6], 1
    %1302 = vsyncpa [#allocation9], 1
    %s1303 = scalar_lea.sflag [#allocation9], 1
    %1304 = vsyncpa %s1303, 1
    %1305 = vsyncpa [#allocation4], 1
    %s1306 = scalar_lea.sflag [#allocation4], 1
    %1307 = vsyncpa %s1306, 1

</llo_original>
